<compile_context>
chip_gen: v7x
topology: tpu7x:2x2x1
jax: 0.10.0
libtpu: 0.0.40
codegen_flags: <defaults>
</compile_context>

<pallas_src>
import functools
import math

import jax
import jax.numpy as jnp
from jax.experimental import pallas as pl
from jax.experimental.pallas import tpu as pltpu


# Lane-dense synthetic config (H = 128 = one vreg lane width).
CFG = dict(vocab=100, hidden=128, n_heads=2, head_dim=64, ffn=512,
           n_layers=2, seq=8, num_labels=4)
LN_EPS = 1e-12


def _bf16(x):
    return x.astype(jnp.bfloat16)


def _layernorm(y, g, b, eps):
    mean = jnp.mean(y, axis=-1, keepdims=True)
    var = jnp.mean((y - mean) ** 2, axis=-1, keepdims=True)
    return (y - mean) * jax.lax.rsqrt(var + eps) * g + b


# ----------------------------------------------------------------------------
# Fused encoder kernel: grid = (batch, layer)
# ----------------------------------------------------------------------------

def _encoder_kernel(x_ref, mask_ref, emb_g_ref, emb_b_ref,
                    wqkv_ref, bqkv_ref, wo_ref, bo_ref, ln1_g_ref, ln1_b_ref,
                    w1_ref, b1_ref, w2_ref, b2_ref, ln2_g_ref, ln2_b_ref,
                    o_ref, x_scr, *, n_heads, head_dim, eps):
    """One grid step = one (batch element, layer) pair.

    Activation is carried in a VMEM scratch across the layer axis; per-layer
    weights are selected by the layer grid coordinate (auto-prefetched).
    """
    layer = pl.program_id(1)

    # Layer 0: apply the embedding LayerNorm to the raw embedding slab.
    @pl.when(layer == 0)
    def _():
        x_scr[...] = _layernorm(x_ref[...], emb_g_ref[...], emb_b_ref[...], eps)

    x = x_scr[...]                                   # (S, H) f32
    S, H = x.shape
    scale = 1.0 / math.sqrt(head_dim)

    # ---- Attention sub-block -------------------------------------------------
    # Fused QKV projection: one MXU pass, lane-dense N = 3H output.
    qkv = jnp.dot(_bf16(x), wqkv_ref[0],
                  preferred_element_type=jnp.float32) + bqkv_ref[0]      # (S, 3H)

    mask = mask_ref[0]                               # (1, S); 1 = attend, 0 = pad
    bias = (1.0 - mask) * (-1e9)                     # additive key-padding bias

    wo = wo_ref[0]                                   # (H, H) bf16
    acc = jnp.zeros((S, H), jnp.float32)
    for h in range(n_heads):
        lo = h * head_dim
        q = _bf16(qkv[:, lo:lo + head_dim])                       # (S, Dh)
        k = _bf16(qkv[:, H + lo:H + lo + head_dim])
        v = _bf16(qkv[:, 2 * H + lo:2 * H + lo + head_dim])
        # scores = q @ k^T (contract head dim), scale + mask in f32
        s = jax.lax.dot_general(q, k, (((1,), (1,)), ((), ())),
                                preferred_element_type=jnp.float32)      # (S, S)
        s = s * scale + bias
        m = jnp.max(s, axis=-1, keepdims=True)
        p = jnp.exp(s - m)
        p = p * pl.reciprocal(jnp.sum(p, axis=-1, keepdims=True), approx=True)
        ctx_h = jnp.dot(_bf16(p), v, preferred_element_type=jnp.float32)  # (S, Dh)
        # fold the output projection per head: sum_h ctx_h @ wo[h*Dh:(h+1)*Dh, :]
        acc = acc + jnp.dot(_bf16(ctx_h), wo[lo:lo + head_dim, :],
                            preferred_element_type=jnp.float32)

    y = acc + bo_ref[0] + x                          # bias + residual
    h1 = _layernorm(y, ln1_g_ref[0], ln1_b_ref[0], eps)

    # ---- FFN sub-block -------------------------------------------------------
    f = jnp.dot(_bf16(h1), w1_ref[0],
                preferred_element_type=jnp.float32) + b1_ref[0]
    # TODO(synk): HF BERT uses exact erf-GELU; tanh approximation kept here
    # (weights are synthetic, no checkpoint parity required).
    f = jax.nn.gelu(f)
    y2 = jnp.dot(_bf16(f), w2_ref[0],
                 preferred_element_type=jnp.float32) + b2_ref[0] + h1
    out = _layernorm(y2, ln2_g_ref[0], ln2_b_ref[0], eps)

    x_scr[...] = out                                 # carry to next layer

    @pl.when(layer == pl.num_programs(1) - 1)
    def _():
        o_ref[...] = out


def encoder(emb_flat, mask3, emb_g, emb_b, stacked, *, B, S, n_heads, head_dim,
            n_layers, ffn, eps=LN_EPS):
    H = n_heads * head_dim
    F = ffn
    NL = n_layers
    return pl.pallas_call(
        functools.partial(_encoder_kernel, n_heads=n_heads, head_dim=head_dim,
                          eps=eps),
        out_shape=jax.ShapeDtypeStruct((B * S, H), jnp.float32),
        grid=(B, NL),
        in_specs=[
            pl.BlockSpec((S, H), lambda b, l: (b, 0)),          # embedding rows of batch b
            pl.BlockSpec((1, 1, S), lambda b, l: (b, 0, 0)),    # key-padding mask
            pl.BlockSpec((1, H), lambda b, l: (0, 0)),          # emb LN gamma
            pl.BlockSpec((1, H), lambda b, l: (0, 0)),          # emb LN beta
            pl.BlockSpec((1, H, 3 * H), lambda b, l: (l, 0, 0)),  # fused QKV weight (bf16)
            pl.BlockSpec((1, 1, 3 * H), lambda b, l: (l, 0, 0)),
            pl.BlockSpec((1, H, H), lambda b, l: (l, 0, 0)),      # output proj (bf16)
            pl.BlockSpec((1, 1, H), lambda b, l: (l, 0, 0)),
            pl.BlockSpec((1, 1, H), lambda b, l: (l, 0, 0)),      # LN1 gamma
            pl.BlockSpec((1, 1, H), lambda b, l: (l, 0, 0)),      # LN1 beta
            pl.BlockSpec((1, H, F), lambda b, l: (l, 0, 0)),      # FFN w1 (bf16)
            pl.BlockSpec((1, 1, F), lambda b, l: (l, 0, 0)),
            pl.BlockSpec((1, F, H), lambda b, l: (l, 0, 0)),      # FFN w2 (bf16)
            pl.BlockSpec((1, 1, H), lambda b, l: (l, 0, 0)),
            pl.BlockSpec((1, 1, H), lambda b, l: (l, 0, 0)),      # LN2 gamma
            pl.BlockSpec((1, 1, H), lambda b, l: (l, 0, 0)),      # LN2 beta
        ],
        out_specs=pl.BlockSpec((S, H), lambda b, l: (b, 0)),
        scratch_shapes=[pltpu.VMEM((S, H), jnp.float32)],
        compiler_params=pltpu.CompilerParams(
            dimension_semantics=("parallel", "arbitrary")),
    )(emb_flat, mask3, emb_g.reshape(1, H), emb_b.reshape(1, H),
      stacked["wqkv"], stacked["bqkv"], stacked["wo"], stacked["bo"],
      stacked["ln1_g"], stacked["ln1_b"],
      stacked["w1"], stacked["b1"], stacked["w2"], stacked["b2"],
      stacked["ln2_g"], stacked["ln2_b"])


# ----------------------------------------------------------------------------
# Fused pooler + classifier head
# ----------------------------------------------------------------------------

def _head_kernel(cls_ref, wp_ref, bp_ref, wc_ref, bc_ref, o_ref):
    """Fused pooler (tanh dense on [CLS]) + classifier dense -> logits."""
    pooled = jnp.tanh(jnp.dot(_bf16(cls_ref[...]), wp_ref[...],
                              preferred_element_type=jnp.float32) + bp_ref[...])
    o_ref[...] = jnp.dot(_bf16(pooled), wc_ref[...],
                         preferred_element_type=jnp.float32) + bc_ref[...]


def classification_head(cls_tok, wp, bp, wc, bc):
    B, H = cls_tok.shape
    L = wc.shape[1]
    return pl.pallas_call(
        _head_kernel,
        out_shape=jax.ShapeDtypeStruct((B, L), jnp.float32),
        in_specs=[pl.BlockSpec((B, H), lambda: (0, 0)),
                  pl.BlockSpec((H, H), lambda: (0, 0)),
                  pl.BlockSpec((1, H), lambda: (0, 0)),
                  pl.BlockSpec((H, L), lambda: (0, 0)),
                  pl.BlockSpec((1, L), lambda: (0, 0))],
        out_specs=pl.BlockSpec((B, L), lambda: (0, 0)),
    )(cls_tok, wp, bp.reshape(1, H), wc, bc.reshape(1, L))


# ----------------------------------------------------------------------------
# Parameters & forward pass
# ----------------------------------------------------------------------------

def init_params(key, cfg):
    H, F, V, S, L, NL = (cfg["hidden"], cfg["ffn"], cfg["vocab"],
                         cfg["seq"], cfg["num_labels"], cfg["n_layers"])

    def nrm(k, shape, dtype=jnp.float32):
        return (0.02 * jax.random.normal(k, shape)).astype(dtype)

    keys = jax.random.split(key, 4 + NL)
    p = {
        "word_emb": nrm(keys[0], (V, H)),
        "pos_emb":  nrm(keys[1], (S, H)),
        "emb_ln_g": jnp.ones((H,), jnp.float32),
        "emb_ln_b": jnp.zeros((H,), jnp.float32),
        # matmul weights stored bf16 (halved HBM traffic, MXU-native operands)
        "pooler_w": nrm(keys[2], (H, H), jnp.bfloat16),
        "pooler_b": jnp.zeros((H,), jnp.float32),
        "cls_w":    nrm(keys[3], (H, L), jnp.bfloat16),
        "cls_b":    jnp.zeros((L,), jnp.float32),
    }
    # Per-layer weights stacked along a leading layer axis so the encoder
    # kernel's BlockSpec pipeline can prefetch layer l+1 while computing l.
    wqkv, bqkv, wo, bo = [], [], [], []
    w1, b1, w2, b2 = [], [], [], []
    ln1_g, ln1_b, ln2_g, ln2_b = [], [], [], []
    for i in range(NL):
        lk = jax.random.split(keys[4 + i], 4)
        wqkv.append(nrm(lk[0], (H, 3 * H), jnp.bfloat16))
        bqkv.append(jnp.zeros((1, 3 * H), jnp.float32))
        wo.append(nrm(lk[1], (H, H), jnp.bfloat16))
        bo.append(jnp.zeros((1, H), jnp.float32))
        w1.append(nrm(lk[2], (H, F), jnp.bfloat16))
        b1.append(jnp.zeros((1, F), jnp.float32))
        w2.append(nrm(lk[3], (F, H), jnp.bfloat16))
        b2.append(jnp.zeros((1, H), jnp.float32))
        ln1_g.append(jnp.ones((1, H), jnp.float32))
        ln1_b.append(jnp.zeros((1, H), jnp.float32))
        ln2_g.append(jnp.ones((1, H), jnp.float32))
        ln2_b.append(jnp.zeros((1, H), jnp.float32))
    p["stacked"] = {
        "wqkv": jnp.stack(wqkv), "bqkv": jnp.stack(bqkv),
        "wo": jnp.stack(wo), "bo": jnp.stack(bo),
        "ln1_g": jnp.stack(ln1_g), "ln1_b": jnp.stack(ln1_b),
        "w1": jnp.stack(w1), "b1": jnp.stack(b1),
        "w2": jnp.stack(w2), "b2": jnp.stack(b2),
        "ln2_g": jnp.stack(ln2_g), "ln2_b": jnp.stack(ln2_b),
    }
    return p


def multilabel_forward(params, input_ids, attention_mask=None, labels=None,
                       cfg=CFG):
    """Mirrors MultiLabelModule.forward: returns (loss_or_None, logits)."""
    B, S = input_ids.shape
    H = cfg["hidden"]
    if attention_mask is None:
        attention_mask = jnp.ones((B, S), jnp.float32)
    mask3 = attention_mask.astype(jnp.float32).reshape(B, 1, S)

    # Embedding lookup is a gather -> plain JAX glue; the embedding LayerNorm
    # and the whole encoder stack run in a single fused Pallas kernel.
    emb = jnp.take(params["word_emb"], input_ids, axis=0) + params["pos_emb"][None]
    x = encoder(emb.reshape(B * S, H), mask3,
                params["emb_ln_g"], params["emb_ln_b"], params["stacked"],
                B=B, S=S, n_heads=cfg["n_heads"], head_dim=cfg["head_dim"],
                n_layers=cfg["n_layers"], ffn=cfg["ffn"])

    cls_tok = x.reshape(B, S, H)[:, 0, :]                           # (B, H)
    logits = classification_head(cls_tok, params["pooler_w"], params["pooler_b"],
                                 params["cls_w"], params["cls_b"])  # (B, L)

    loss = None
    if labels is not None:
        # BCE-with-logits, mean reduction (torch default). Output is 2x4 = 32
        # bytes -> plain JAX; a pallas_call here would be pure launch overhead.
        z = logits
        y = labels.astype(jnp.float32)
        loss = jnp.mean(jnp.maximum(z, 0.0) - z * y
                        + jnp.log1p(jnp.exp(-jnp.abs(z))))
    return loss, logits


# ----------------------------------------------------------------------------
# Demo
# ----------------------------------------------------------------------------

if __name__ == "__main__":
    cfg = CFG
    key = jax.random.PRNGKey(0)
    k_param, k_ids, k_lbl = jax.random.split(key, 3)

    params = init_params(k_param, cfg)

    B, S = 2, cfg["seq"]
    input_ids = jax.random.randint(k_ids, (B, S), 0, cfg["vocab"], dtype=jnp.int32)
    attention_mask = jnp.ones((B, S), jnp.float32).at[1, 6:].set(0.0)  # padding
    labels = (jax.random.uniform(k_lbl, (B, cfg["num_labels"])) > 0.5
              ).astype(jnp.float32)                                    # multi-hot

    loss, logits = multilabel_forward(params, input_ids, attention_mask, labels)
    jax.block_until_ready((loss, logits))

    assert logits.shape == (B, cfg["num_labels"])
    assert loss.shape == ()
    assert bool(jnp.isfinite(loss)) and bool(jnp.all(jnp.isfinite(logits)))
    # TODO(synk): pretrained-checkpoint loading and layer freezing (requires_grad)
    # have no forward-pass equivalent; weights are synthetic & deterministic.
    print("KERNEL_OK")
</pallas_src>

<mosaic_0001>
module attributes {stable_mosaic.version = 11 : i64} {
  func.func @_encoder_kernel(%arg0: i32, %arg1: i32, %arg2: memref<8x128xf32, #tpu.memory_space<vmem>>, %arg3: memref<1x1x8xf32, #tpu.memory_space<vmem>>, %arg4: memref<1x128xf32, #tpu.memory_space<vmem>>, %arg5: memref<1x128xf32, #tpu.memory_space<vmem>>, %arg6: memref<1x128x384xbf16, #tpu.memory_space<vmem>>, %arg7: memref<1x1x384xf32, #tpu.memory_space<vmem>>, %arg8: memref<1x128x128xbf16, #tpu.memory_space<vmem>>, %arg9: memref<1x1x128xf32, #tpu.memory_space<vmem>>, %arg10: memref<1x1x128xf32, #tpu.memory_space<vmem>>, %arg11: memref<1x1x128xf32, #tpu.memory_space<vmem>>, %arg12: memref<1x128x512xbf16, #tpu.memory_space<vmem>>, %arg13: memref<1x1x512xf32, #tpu.memory_space<vmem>>, %arg14: memref<1x512x128xbf16, #tpu.memory_space<vmem>>, %arg15: memref<1x1x128xf32, #tpu.memory_space<vmem>>, %arg16: memref<1x1x128xf32, #tpu.memory_space<vmem>>, %arg17: memref<1x1x128xf32, #tpu.memory_space<vmem>>, %arg18: memref<8x128xf32, #tpu.memory_space<vmem>>, %arg19: memref<8x128xf32, #tpu.memory_space<vmem>>) attributes {dimension_semantics = [#tpu.dimension_semantics<parallel>, #tpu.dimension_semantics<arbitrary>], iteration_bounds = array<i64: 2, 2>, scalar_prefetch = 0 : i64, scratch_operands = 1 : i64, tpu.core_type = #tpu.core_type<tc>, window_params = [{transform_indices = @transform_0, window_bounds = array<i64: 8, 128>}, {transform_indices = @transform_1, window_bounds = array<i64: 1, 1, 8>}, {pipeline_mode = #tpu.pipeline_mode<synchronous>, transform_indices = @transform_2, window_bounds = array<i64: 1, 128>}, {pipeline_mode = #tpu.pipeline_mode<synchronous>, transform_indices = @transform_3, window_bounds = array<i64: 1, 128>}, {transform_indices = @transform_4, window_bounds = array<i64: 1, 128, 384>}, {transform_indices = @transform_5, window_bounds = array<i64: 1, 1, 384>}, {transform_indices = @transform_6, window_bounds = array<i64: 1, 128, 128>}, {transform_indices = @transform_7, window_bounds = array<i64: 1, 1, 128>}, {transform_indices = @transform_8, window_bounds = array<i64: 1, 1, 128>}, {transform_indices = @transform_9, window_bounds = array<i64: 1, 1, 128>}, {transform_indices = @transform_10, window_bounds = array<i64: 1, 128, 512>}, {transform_indices = @transform_11, window_bounds = array<i64: 1, 1, 512>}, {transform_indices = @transform_12, window_bounds = array<i64: 1, 512, 128>}, {transform_indices = @transform_13, window_bounds = array<i64: 1, 1, 128>}, {transform_indices = @transform_14, window_bounds = array<i64: 1, 1, 128>}, {transform_indices = @transform_15, window_bounds = array<i64: 1, 1, 128>}, {transform_indices = @transform_16, window_bounds = array<i64: 8, 128>}]} {
    %c0_i32 = arith.constant 0 : i32
    %0 = arith.cmpi eq, %arg1, %c0_i32 : i32
    %1 = arith.extui %0 : i1 to i32
    %c0_i32_0 = arith.constant 0 : i32
    %2 = arith.cmpi ne, %1, %c0_i32_0 : i32
    scf.if %2 {
      %c0_75 = arith.constant 0 : index
      %c0_76 = arith.constant 0 : index
      %166 = vector.load %arg2[%c0_75, %c0_76] : memref<8x128xf32, #tpu.memory_space<vmem>>, vector<8x128xf32>
      %c0_77 = arith.constant 0 : index
      %c0_78 = arith.constant 0 : index
      %167 = vector.load %arg4[%c0_77, %c0_78] : memref<1x128xf32, #tpu.memory_space<vmem>>, vector<1x128xf32>
      %c0_79 = arith.constant 0 : index
      %c0_80 = arith.constant 0 : index
      %168 = vector.load %arg5[%c0_79, %c0_80] : memref<1x128xf32, #tpu.memory_space<vmem>>, vector<1x128xf32>
      %cst_81 = arith.constant dense<0.000000e+00> : vector<8xf32>
      %169 = vector.multi_reduction <add>, %166, %cst_81 [1] : vector<8x128xf32> to vector<8xf32>
      %170 = vector.shape_cast %169 : vector<8xf32> to vector<8x1xf32>
      %cst_82 = arith.constant 1.280000e+02 : f32
      %171 = vector.broadcast %cst_82 : f32 to vector<8x1xf32>
      %172 = arith.divf %170, %171 : vector<8x1xf32>
      %173 = vector.broadcast %172 : vector<8x1xf32> to vector<8x128xf32>
      %174 = arith.subf %166, %173 : vector<8x128xf32>
      %175 = arith.mulf %174, %174 : vector<8x128xf32>
      %cst_83 = arith.constant dense<0.000000e+00> : vector<8xf32>
      %176 = vector.multi_reduction <add>, %175, %cst_83 [1] : vector<8x128xf32> to vector<8xf32>
      %177 = vector.shape_cast %176 : vector<8xf32> to vector<8x1xf32>
      %cst_84 = arith.constant 1.280000e+02 : f32
      %178 = vector.broadcast %cst_84 : f32 to vector<8x1xf32>
      %179 = arith.divf %177, %178 : vector<8x1xf32>
      %180 = vector.broadcast %172 : vector<8x1xf32> to vector<8x128xf32>
      %181 = arith.subf %166, %180 : vector<8x128xf32>
      %cst_85 = arith.constant 9.99999996E-13 : f32
      %182 = vector.broadcast %cst_85 : f32 to vector<8x1xf32>
      %183 = arith.addf %179, %182 : vector<8x1xf32>
      %184 = math.rsqrt %183 : vector<8x1xf32>
      %185 = vector.broadcast %184 : vector<8x1xf32> to vector<8x128xf32>
      %186 = arith.mulf %181, %185 : vector<8x128xf32>
      %187 = vector.broadcast %167 : vector<1x128xf32> to vector<8x128xf32>
      %188 = arith.mulf %186, %187 : vector<8x128xf32>
      %189 = vector.broadcast %168 : vector<1x128xf32> to vector<8x128xf32>
      %190 = arith.addf %188, %189 : vector<8x128xf32>
      %c0_86 = arith.constant 0 : index
      %c0_87 = arith.constant 0 : index
      %191 = vector.load %arg19[%c0_86, %c0_87] : memref<8x128xf32, #tpu.memory_space<vmem>>, vector<8x128xf32>
      tpu.vector_store %arg19[%c0_86, %c0_87], %190 {strides = array<i32>} : memref<8x128xf32, #tpu.memory_space<vmem>>, vector<8x128xf32>,
    } else {
    }
    %c0 = arith.constant 0 : index
    %c0_1 = arith.constant 0 : index
    %3 = vector.load %arg19[%c0, %c0_1] : memref<8x128xf32, #tpu.memory_space<vmem>>, vector<8x128xf32>
    %4 = arith.truncf %3 : vector<8x128xf32> to vector<8x128xbf16>
    %c0_2 = arith.constant 0 : index
    %c0_3 = arith.constant 0 : index
    %c0_4 = arith.constant 0 : index
    %5 = vector.load %arg6[%c0_2, %c0_3, %c0_4] : memref<1x128x384xbf16, #tpu.memory_space<vmem>>, vector<1x128x384xbf16>
    %6 = vector.shape_cast %5 : vector<1x128x384xbf16> to vector<128x384xbf16>
    %cst = arith.constant dense<0.000000e+00> : vector<8x384xf32>
    %7 = tpu.matmul %4, %6, %cst {dimension_numbers = #tpu.dot_dimension_numbers<[1], [0], [0], [1], [0, 0, 1, 1], [], []>} : vector<8x128xbf16>, vector<128x384xbf16>, vector<8x384xf32> -> vector<8x384xf32>
    %c0_5 = arith.constant 0 : index
    %c0_6 = arith.constant 0 : index
    %c0_7 = arith.constant 0 : index
    %8 = vector.load %arg7[%c0_5, %c0_6, %c0_7] : memref<1x1x384xf32, #tpu.memory_space<vmem>>, vector<1x1x384xf32>
    %9 = vector.shape_cast %8 : vector<1x1x384xf32> to vector<1x384xf32>
    %10 = vector.broadcast %9 : vector<1x384xf32> to vector<8x384xf32>
    %11 = arith.addf %7, %10 : vector<8x384xf32>
    %c0_8 = arith.constant 0 : index
    %c0_9 = arith.constant 0 : index
    %c0_10 = arith.constant 0 : index
    %12 = vector.load %arg3[%c0_8, %c0_9, %c0_10] : memref<1x1x8xf32, #tpu.memory_space<vmem>>, vector<1x1x8xf32>
    %13 = vector.shape_cast %12 : vector<1x1x8xf32> to vector<1x8xf32>
    %cst_11 = arith.constant 1.000000e+00 : f32
    %14 = vector.broadcast %cst_11 : f32 to vector<1x8xf32>
    %15 = arith.subf %14, %13 : vector<1x8xf32>
    %cst_12 = arith.constant -1.000000e+09 : f32
    %16 = vector.broadcast %cst_12 : f32 to vector<1x8xf32>
    %17 = arith.mulf %15, %16 : vector<1x8xf32>
    %c0_13 = arith.constant 0 : index
    %c0_14 = arith.constant 0 : index
    %c0_15 = arith.constant 0 : index
    %18 = vector.load %arg8[%c0_13, %c0_14, %c0_15] : memref<1x128x128xbf16, #tpu.memory_space<vmem>>, vector<1x128x128xbf16>
    %19 = vector.shape_cast %18 : vector<1x128x128xbf16> to vector<128x128xbf16>
    %cst_16 = arith.constant 0.000000e+00 : f32
    %20 = vector.broadcast %cst_16 : f32 to vector<8x128xf32>
    %21 = vector.extract_strided_slice %11 {offsets = [0, 0], sizes = [8, 64], strides = [1, 1]} : vector<8x384xf32> to vector<8x64xf32>
    %22 = arith.truncf %21 : vector<8x64xf32> to vector<8x64xbf16>
    %23 = vector.extract_strided_slice %11 {offsets = [0, 128], sizes = [8, 64], strides = [1, 1]} : vector<8x384xf32> to vector<8x64xf32>
    %24 = arith.truncf %23 : vector<8x64xf32> to vector<8x64xbf16>
    %25 = vector.extract_strided_slice %11 {offsets = [0, 256], sizes = [8, 64], strides = [1, 1]} : vector<8x384xf32> to vector<8x64xf32>
    %26 = arith.truncf %25 : vector<8x64xf32> to vector<8x64xbf16>
    %cst_17 = arith.constant dense<0.000000e+00> : vector<8x8xf32>
    %27 = tpu.matmul %22, %24, %cst_17 {dimension_numbers = #tpu.dot_dimension_numbers<[1], [1], [0], [0], [0, 0, 1, 0], [], []>} : vector<8x64xbf16>, vector<8x64xbf16>, vector<8x8xf32> -> vector<8x8xf32>
    %cst_18 = arith.constant 1.250000e-01 : f32
    %28 = vector.broadcast %cst_18 : f32 to vector<8x8xf32>
    %29 = arith.mulf %27, %28 : vector<8x8xf32>
    %30 = vector.broadcast %17 : vector<1x8xf32> to vector<8x8xf32>
    %31 = arith.addf %29, %30 : vector<8x8xf32>
    %cst_19 = arith.constant dense<0xFF800000> : vector<8xf32>
    %32 = vector.multi_reduction <maximumf>, %31, %cst_19 [1] : vector<8x8xf32> to vector<8xf32>
    %33 = vector.shape_cast %32 : vector<8xf32> to vector<8x1xf32>
    %34 = vector.broadcast %33 : vector<8x1xf32> to vector<8x8xf32>
    %35 = arith.subf %31, %34 : vector<8x8xf32>
    %36 = math.exp %35 : vector<8x8xf32>
    %cst_20 = arith.constant dense<0.000000e+00> : vector<8xf32>
    %37 = vector.multi_reduction <add>, %36, %cst_20 [1] : vector<8x8xf32> to vector<8xf32>
    %38 = vector.shape_cast %37 : vector<8xf32> to vector<8x1xf32>
    %39 = tpu.reciprocal %38 {approx = true} : vector<8x1xf32> -> vector<8x1xf32>
    %40 = vector.broadcast %39 : vector<8x1xf32> to vector<8x8xf32>
    %41 = arith.mulf %36, %40 : vector<8x8xf32>
    %42 = arith.truncf %41 : vector<8x8xf32> to vector<8x8xbf16>
    %cst_21 = arith.constant dense<0.000000e+00> : vector<8x64xf32>
    %43 = tpu.matmul %42, %26, %cst_21 {dimension_numbers = #tpu.dot_dimension_numbers<[1], [0], [0], [1], [0, 0, 1, 1], [], []>} : vector<8x8xbf16>, vector<8x64xbf16>, vector<8x64xf32> -> vector<8x64xf32>
    %44 = arith.truncf %43 : vector<8x64xf32> to vector<8x64xbf16>
    %45 = vector.extract_strided_slice %19 {offsets = [0, 0], sizes = [64, 128], strides = [1, 1]} : vector<128x128xbf16> to vector<64x128xbf16>
    %cst_22 = arith.constant dense<0.000000e+00> : vector<8x128xf32>
    %46 = tpu.matmul %44, %45, %cst_22 {dimension_numbers = #tpu.dot_dimension_numbers<[1], [0], [0], [1], [0, 0, 1, 1], [], []>} : vector<8x64xbf16>, vector<64x128xbf16>, vector<8x128xf32> -> vector<8x128xf32>
    %47 = arith.addf %20, %46 : vector<8x128xf32>
    %48 = vector.extract_strided_slice %11 {offsets = [0, 64], sizes = [8, 64], strides = [1, 1]} : vector<8x384xf32> to vector<8x64xf32>
    %49 = arith.truncf %48 : vector<8x64xf32> to vector<8x64xbf16>
    %50 = vector.extract_strided_slice %11 {offsets = [0, 192], sizes = [8, 64], strides = [1, 1]} : vector<8x384xf32> to vector<8x64xf32>
    %51 = arith.truncf %50 : vector<8x64xf32> to vector<8x64xbf16>
    %52 = vector.extract_strided_slice %11 {offsets = [0, 320], sizes = [8, 64], strides = [1, 1]} : vector<8x384xf32> to vector<8x64xf32>
    %53 = arith.truncf %52 : vector<8x64xf32> to vector<8x64xbf16>
    %cst_23 = arith.constant dense<0.000000e+00> : vector<8x8xf32>
    %54 = tpu.matmul %49, %51, %cst_23 {dimension_numbers = #tpu.dot_dimension_numbers<[1], [1], [0], [0], [0, 0, 1, 0], [], []>} : vector<8x64xbf16>, vector<8x64xbf16>, vector<8x8xf32> -> vector<8x8xf32>
    %cst_24 = arith.constant 1.250000e-01 : f32
    %55 = vector.broadcast %cst_24 : f32 to vector<8x8xf32>
    %56 = arith.mulf %54, %55 : vector<8x8xf32>
    %57 = vector.broadcast %17 : vector<1x8xf32> to vector<8x8xf32>
    %58 = arith.addf %56, %57 : vector<8x8xf32>
    %cst_25 = arith.constant dense<0xFF800000> : vector<8xf32>
    %59 = vector.multi_reduction <maximumf>, %58, %cst_25 [1] : vector<8x8xf32> to vector<8xf32>
    %60 = vector.shape_cast %59 : vector<8xf32> to vector<8x1xf32>
    %61 = vector.broadcast %60 : vector<8x1xf32> to vector<8x8xf32>
    %62 = arith.subf %58, %61 : vector<8x8xf32>
    %63 = math.exp %62 : vector<8x8xf32>
    %cst_26 = arith.constant dense<0.000000e+00> : vector<8xf32>
    %64 = vector.multi_reduction <add>, %63, %cst_26 [1] : vector<8x8xf32> to vector<8xf32>
    %65 = vector.shape_cast %64 : vector<8xf32> to vector<8x1xf32>
    %66 = tpu.reciprocal %65 {approx = true} : vector<8x1xf32> -> vector<8x1xf32>
    %67 = vector.broadcast %66 : vector<8x1xf32> to vector<8x8xf32>
    %68 = arith.mulf %63, %67 : vector<8x8xf32>
    %69 = arith.truncf %68 : vector<8x8xf32> to vector<8x8xbf16>
    %cst_27 = arith.constant dense<0.000000e+00> : vector<8x64xf32>
    %70 = tpu.matmul %69, %53, %cst_27 {dimension_numbers = #tpu.dot_dimension_numbers<[1], [0], [0], [1], [0, 0, 1, 1], [], []>} : vector<8x8xbf16>, vector<8x64xbf16>, vector<8x64xf32> -> vector<8x64xf32>
    %71 = arith.truncf %70 : vector<8x64xf32> to vector<8x64xbf16>
    %72 = vector.extract_strided_slice %19 {offsets = [64, 0], sizes = [64, 128], strides = [1, 1]} : vector<128x128xbf16> to vector<64x128xbf16>
    %cst_28 = arith.constant dense<0.000000e+00> : vector<8x128xf32>
    %73 = tpu.matmul %71, %72, %cst_28 {dimension_numbers = #tpu.dot_dimension_numbers<[1], [0], [0], [1], [0, 0, 1, 1], [], []>} : vector<8x64xbf16>, vector<64x128xbf16>, vector<8x128xf32> -> vector<8x128xf32>
    %74 = arith.addf %47, %73 : vector<8x128xf32>
    %c0_29 = arith.constant 0 : index
    %c0_30 = arith.constant 0 : index
    %c0_31 = arith.constant 0 : index
    %75 = vector.load %arg9[%c0_29, %c0_30, %c0_31] : memref<1x1x128xf32, #tpu.memory_space<vmem>>, vector<1x1x128xf32>
    %76 = vector.shape_cast %75 : vector<1x1x128xf32> to vector<1x128xf32>
    %77 = vector.broadcast %76 : vector<1x128xf32> to vector<8x128xf32>
    %78 = arith.addf %74, %77 : vector<8x128xf32>
    %79 = arith.addf %78, %3 : vector<8x128xf32>
    %c0_32 = arith.constant 0 : index
    %c0_33 = arith.constant 0 : index
    %c0_34 = arith.constant 0 : index
    %80 = vector.load %arg10[%c0_32, %c0_33, %c0_34] : memref<1x1x128xf32, #tpu.memory_space<vmem>>, vector<1x1x128xf32>
    %81 = vector.shape_cast %80 : vector<1x1x128xf32> to vector<1x128xf32>
    %c0_35 = arith.constant 0 : index
    %c0_36 = arith.constant 0 : index
    %c0_37 = arith.constant 0 : index
    %82 = vector.load %arg11[%c0_35, %c0_36, %c0_37] : memref<1x1x128xf32, #tpu.memory_space<vmem>>, vector<1x1x128xf32>
    %83 = vector.shape_cast %82 : vector<1x1x128xf32> to vector<1x128xf32>
    %cst_38 = arith.constant dense<0.000000e+00> : vector<8xf32>
    %84 = vector.multi_reduction <add>, %79, %cst_38 [1] : vector<8x128xf32> to vector<8xf32>
    %85 = vector.shape_cast %84 : vector<8xf32> to vector<8x1xf32>
    %cst_39 = arith.constant 1.280000e+02 : f32
    %86 = vector.broadcast %cst_39 : f32 to vector<8x1xf32>
    %87 = arith.divf %85, %86 : vector<8x1xf32>
    %88 = vector.broadcast %87 : vector<8x1xf32> to vector<8x128xf32>
    %89 = arith.subf %79, %88 : vector<8x128xf32>
    %90 = arith.mulf %89, %89 : vector<8x128xf32>
    %cst_40 = arith.constant dense<0.000000e+00> : vector<8xf32>
    %91 = vector.multi_reduction <add>, %90, %cst_40 [1] : vector<8x128xf32> to vector<8xf32>
    %92 = vector.shape_cast %91 : vector<8xf32> to vector<8x1xf32>
    %cst_41 = arith.constant 1.280000e+02 : f32
    %93 = vector.broadcast %cst_41 : f32 to vector<8x1xf32>
    %94 = arith.divf %92, %93 : vector<8x1xf32>
    %95 = vector.broadcast %87 : vector<8x1xf32> to vector<8x128xf32>
    %96 = arith.subf %79, %95 : vector<8x128xf32>
    %cst_42 = arith.constant 9.99999996E-13 : f32
    %97 = vector.broadcast %cst_42 : f32 to vector<8x1xf32>
    %98 = arith.addf %94, %97 : vector<8x1xf32>
    %99 = math.rsqrt %98 : vector<8x1xf32>
    %100 = vector.broadcast %99 : vector<8x1xf32> to vector<8x128xf32>
    %101 = arith.mulf %96, %100 : vector<8x128xf32>
    %102 = vector.broadcast %81 : vector<1x128xf32> to vector<8x128xf32>
    %103 = arith.mulf %101, %102 : vector<8x128xf32>
    %104 = vector.broadcast %83 : vector<1x128xf32> to vector<8x128xf32>
    %105 = arith.addf %103, %104 : vector<8x128xf32>
    %106 = arith.truncf %105 : vector<8x128xf32> to vector<8x128xbf16>
    %c0_43 = arith.constant 0 : index
    %c0_44 = arith.constant 0 : index
    %c0_45 = arith.constant 0 : index
    %107 = vector.load %arg12[%c0_43, %c0_44, %c0_45] : memref<1x128x512xbf16, #tpu.memory_space<vmem>>, vector<1x128x512xbf16>
    %108 = vector.shape_cast %107 : vector<1x128x512xbf16> to vector<128x512xbf16>
    %cst_46 = arith.constant dense<0.000000e+00> : vector<8x512xf32>
    %109 = tpu.matmul %106, %108, %cst_46 {dimension_numbers = #tpu.dot_dimension_numbers<[1], [0], [0], [1], [0, 0, 1, 1], [], []>} : vector<8x128xbf16>, vector<128x512xbf16>, vector<8x512xf32> -> vector<8x512xf32>
    %c0_47 = arith.constant 0 : index
    %c0_48 = arith.constant 0 : index
    %c0_49 = arith.constant 0 : index
    %110 = vector.load %arg13[%c0_47, %c0_48, %c0_49] : memref<1x1x512xf32, #tpu.memory_space<vmem>>, vector<1x1x512xf32>
    %111 = vector.shape_cast %110 : vector<1x1x512xf32> to vector<1x512xf32>
    %112 = vector.broadcast %111 : vector<1x512xf32> to vector<8x512xf32>
    %113 = arith.addf %109, %112 : vector<8x512xf32>
    %114 = arith.mulf %113, %113 : vector<8x512xf32>
    %115 = arith.mulf %113, %114 : vector<8x512xf32>
    %cst_50 = arith.constant 4.471500e-02 : f32
    %116 = vector.broadcast %cst_50 : f32 to vector<8x512xf32>
    %117 = arith.mulf %116, %115 : vector<8x512xf32>
    %118 = arith.addf %113, %117 : vector<8x512xf32>
    %cst_51 = arith.constant 0.797884583 : f32
    %119 = vector.broadcast %cst_51 : f32 to vector<8x512xf32>
    %120 = arith.mulf %119, %118 : vector<8x512xf32>
    %121 = math.tanh %120 : vector<8x512xf32>
    %cst_52 = arith.constant 1.000000e+00 : f32
    %122 = vector.broadcast %cst_52 : f32 to vector<8x512xf32>
    %123 = arith.addf %122, %121 : vector<8x512xf32>
    %cst_53 = arith.constant 5.000000e-01 : f32
    %124 = vector.broadcast %cst_53 : f32 to vector<8x512xf32>
    %125 = arith.mulf %124, %123 : vector<8x512xf32>
    %126 = arith.mulf %113, %125 : vector<8x512xf32>
    %127 = arith.truncf %126 : vector<8x512xf32> to vector<8x512xbf16>
    %c0_54 = arith.constant 0 : index
    %c0_55 = arith.constant 0 : index
    %c0_56 = arith.constant 0 : index
    %128 = vector.load %arg14[%c0_54, %c0_55, %c0_56] : memref<1x512x128xbf16, #tpu.memory_space<vmem>>, vector<1x512x128xbf16>
    %129 = vector.shape_cast %128 : vector<1x512x128xbf16> to vector<512x128xbf16>
    %cst_57 = arith.constant dense<0.000000e+00> : vector<8x128xf32>
    %130 = tpu.matmul %127, %129, %cst_57 {dimension_numbers = #tpu.dot_dimension_numbers<[1], [0], [0], [1], [0, 0, 1, 1], [], []>} : vector<8x512xbf16>, vector<512x128xbf16>, vector<8x128xf32> -> vector<8x128xf32>
    %c0_58 = arith.constant 0 : index
    %c0_59 = arith.constant 0 : index
    %c0_60 = arith.constant 0 : index
    %131 = vector.load %arg15[%c0_58, %c0_59, %c0_60] : memref<1x1x128xf32, #tpu.memory_space<vmem>>, vector<1x1x128xf32>
    %132 = vector.shape_cast %131 : vector<1x1x128xf32> to vector<1x128xf32>
    %133 = vector.broadcast %132 : vector<1x128xf32> to vector<8x128xf32>
    %134 = arith.addf %130, %133 : vector<8x128xf32>
    %135 = arith.addf %134, %105 : vector<8x128xf32>
    %c0_61 = arith.constant 0 : index
    %c0_62 = arith.constant 0 : index
    %c0_63 = arith.constant 0 : index
    %136 = vector.load %arg16[%c0_61, %c0_62, %c0_63] : memref<1x1x128xf32, #tpu.memory_space<vmem>>, vector<1x1x128xf32>
    %137 = vector.shape_cast %136 : vector<1x1x128xf32> to vector<1x128xf32>
    %c0_64 = arith.constant 0 : index
    %c0_65 = arith.constant 0 : index
    %c0_66 = arith.constant 0 : index
    %138 = vector.load %arg17[%c0_64, %c0_65, %c0_66] : memref<1x1x128xf32, #tpu.memory_space<vmem>>, vector<1x1x128xf32>
    %139 = vector.shape_cast %138 : vector<1x1x128xf32> to vector<1x128xf32>
    %cst_67 = arith.constant dense<0.000000e+00> : vector<8xf32>
    %140 = vector.multi_reduction <add>, %135, %cst_67 [1] : vector<8x128xf32> to vector<8xf32>
    %141 = vector.shape_cast %140 : vector<8xf32> to vector<8x1xf32>
    %cst_68 = arith.constant 1.280000e+02 : f32
    %142 = vector.broadcast %cst_68 : f32 to vector<8x1xf32>
    %143 = arith.divf %141, %142 : vector<8x1xf32>
    %144 = vector.broadcast %143 : vector<8x1xf32> to vector<8x128xf32>
    %145 = arith.subf %135, %144 : vector<8x128xf32>
    %146 = arith.mulf %145, %145 : vector<8x128xf32>
    %cst_69 = arith.constant dense<0.000000e+00> : vector<8xf32>
    %147 = vector.multi_reduction <add>, %146, %cst_69 [1] : vector<8x128xf32> to vector<8xf32>
    %148 = vector.shape_cast %147 : vector<8xf32> to vector<8x1xf32>
    %cst_70 = arith.constant 1.280000e+02 : f32
    %149 = vector.broadcast %cst_70 : f32 to vector<8x1xf32>
    %150 = arith.divf %148, %149 : vector<8x1xf32>
    %151 = vector.broadcast %143 : vector<8x1xf32> to vector<8x128xf32>
    %152 = arith.subf %135, %151 : vector<8x128xf32>
    %cst_71 = arith.constant 9.99999996E-13 : f32
    %153 = vector.broadcast %cst_71 : f32 to vector<8x1xf32>
    %154 = arith.addf %150, %153 : vector<8x1xf32>
    %155 = math.rsqrt %154 : vector<8x1xf32>
    %156 = vector.broadcast %155 : vector<8x1xf32> to vector<8x128xf32>
    %157 = arith.mulf %152, %156 : vector<8x128xf32>
    %158 = vector.broadcast %137 : vector<1x128xf32> to vector<8x128xf32>
    %159 = arith.mulf %157, %158 : vector<8x128xf32>
    %160 = vector.broadcast %139 : vector<1x128xf32> to vector<8x128xf32>
    %161 = arith.addf %159, %160 : vector<8x128xf32>
    %c0_72 = arith.constant 0 : index
    %c0_73 = arith.constant 0 : index
    %162 = vector.load %arg19[%c0_72, %c0_73] : memref<8x128xf32, #tpu.memory_space<vmem>>, vector<8x128xf32>
    tpu.vector_store %arg19[%c0_72, %c0_73], %161 {strides = array<i32>} : memref<8x128xf32, #tpu.memory_space<vmem>>, vector<8x128xf32>,
    %c1_i32 = arith.constant 1 : i32
    %163 = arith.cmpi eq, %arg1, %c1_i32 : i32
    %164 = arith.extui %163 : i1 to i32
    %c0_i32_74 = arith.constant 0 : i32
    %165 = arith.cmpi ne, %164, %c0_i32_74 : i32
    scf.if %165 {
      %c0_75 = arith.constant 0 : index
      %c0_76 = arith.constant 0 : index
      %166 = vector.load %arg18[%c0_75, %c0_76] : memref<8x128xf32, #tpu.memory_space<vmem>>, vector<8x128xf32>
      tpu.vector_store %arg18[%c0_75, %c0_76], %161 {strides = array<i32>} : memref<8x128xf32, #tpu.memory_space<vmem>>, vector<8x128xf32>,
    } else {
    }
    return
  }
  func.func @transform_0(%arg0: i32, %arg1: i32) -> (i32, i32) {
    %c0_i32 = arith.constant 0 : i32
    %c0_i32_0 = arith.constant 0 : i32
    return %arg0, %c0_i32 : i32, i32
  }
  func.func @transform_1(%arg0: i32, %arg1: i32) -> (i32, i32, i32) {
    %c0_i32 = arith.constant 0 : i32
    %c0_i32_0 = arith.constant 0 : i32
    %c0_i32_1 = arith.constant 0 : i32
    return %arg0, %c0_i32, %c0_i32_0 : i32, i32, i32
  }
  func.func @transform_2(%arg0: i32, %arg1: i32) -> (i32, i32) {
    %c0_i32 = arith.constant 0 : i32
    %c0_i32_0 = arith.constant 0 : i32
    %c0_i32_1 = arith.constant 0 : i32
    return %c0_i32, %c0_i32_0 : i32, i32
  }
  func.func @transform_3(%arg0: i32, %arg1: i32) -> (i32, i32) {
    %c0_i32 = arith.constant 0 : i32
    %c0_i32_0 = arith.constant 0 : i32
    %c0_i32_1 = arith.constant 0 : i32
    return %c0_i32, %c0_i32_0 : i32, i32
  }
  func.func @transform_4(%arg0: i32, %arg1: i32) -> (i32, i32, i32) {
    %c0_i32 = arith.constant 0 : i32
    %c0_i32_0 = arith.constant 0 : i32
    %c0_i32_1 = arith.constant 0 : i32
    return %arg1, %c0_i32, %c0_i32_0 : i32, i32, i32
  }
  func.func @transform_5(%arg0: i32, %arg1: i32) -> (i32, i32, i32) {
    %c0_i32 = arith.constant 0 : i32
    %c0_i32_0 = arith.constant 0 : i32
    %c0_i32_1 = arith.constant 0 : i32
    return %arg1, %c0_i32, %c0_i32_0 : i32, i32, i32
  }
  func.func @transform_6(%arg0: i32, %arg1: i32) -> (i32, i32, i32) {
    %c0_i32 = arith.constant 0 : i32
    %c0_i32_0 = arith.constant 0 : i32
    %c0_i32_1 = arith.constant 0 : i32
    return %arg1, %c0_i32, %c0_i32_0 : i32, i32, i32
  }
  func.func @transform_7(%arg0: i32, %arg1: i32) -> (i32, i32, i32) {
    %c0_i32 = arith.constant 0 : i32
    %c0_i32_0 = arith.constant 0 : i32
    %c0_i32_1 = arith.constant 0 : i32
    return %arg1, %c0_i32, %c0_i32_0 : i32, i32, i32
  }
  func.func @transform_8(%arg0: i32, %arg1: i32) -> (i32, i32, i32) {
    %c0_i32 = arith.constant 0 : i32
    %c0_i32_0 = arith.constant 0 : i32
    %c0_i32_1 = arith.constant 0 : i32
    return %arg1, %c0_i32, %c0_i32_0 : i32, i32, i32
  }
  func.func @transform_9(%arg0: i32, %arg1: i32) -> (i32, i32, i32) {
    %c0_i32 = arith.constant 0 : i32
    %c0_i32_0 = arith.constant 0 : i32
    %c0_i32_1 = arith.constant 0 : i32
    return %arg1, %c0_i32, %c0_i32_0 : i32, i32, i32
  }
  func.func @transform_10(%arg0: i32, %arg1: i32) -> (i32, i32, i32) {
    %c0_i32 = arith.constant 0 : i32
    %c0_i32_0 = arith.constant 0 : i32
    %c0_i32_1 = arith.constant 0 : i32
    return %arg1, %c0_i32, %c0_i32_0 : i32, i32, i32
  }
  func.func @transform_11(%arg0: i32, %arg1: i32) -> (i32, i32, i32) {
    %c0_i32 = arith.constant 0 : i32
    %c0_i32_0 = arith.constant 0 : i32
    %c0_i32_1 = arith.constant 0 : i32
    return %arg1, %c0_i32, %c0_i32_0 : i32, i32, i32
  }
  func.func @transform_12(%arg0: i32, %arg1: i32) -> (i32, i32, i32) {
    %c0_i32 = arith.constant 0 : i32
    %c0_i32_0 = arith.constant 0 : i32
    %c0_i32_1 = arith.constant 0 : i32
    return %arg1, %c0_i32, %c0_i32_0 : i32, i32, i32
  }
  func.func @transform_13(%arg0: i32, %arg1: i32) -> (i32, i32, i32) {
    %c0_i32 = arith.constant 0 : i32
    %c0_i32_0 = arith.constant 0 : i32
    %c0_i32_1 = arith.constant 0 : i32
    return %arg1, %c0_i32, %c0_i32_0 : i32, i32, i32
  }
  func.func @transform_14(%arg0: i32, %arg1: i32) -> (i32, i32, i32) {
    %c0_i32 = arith.constant 0 : i32
    %c0_i32_0 = arith.constant 0 : i32
    %c0_i32_1 = arith.constant 0 : i32
    return %arg1, %c0_i32, %c0_i32_0 : i32, i32, i32
  }
  func.func @transform_15(%arg0: i32, %arg1: i32) -> (i32, i32, i32) {
    %c0_i32 = arith.constant 0 : i32
    %c0_i32_0 = arith.constant 0 : i32
    %c0_i32_1 = arith.constant 0 : i32
    return %arg1, %c0_i32, %c0_i32_0 : i32, i32, i32
  }
  func.func @transform_16(%arg0: i32, %arg1: i32) -> (i32, i32) {
    %c0_i32 = arith.constant 0 : i32
    %c0_i32_0 = arith.constant 0 : i32
    return %arg0, %c0_i32 : i32, i32
  }
}

</mosaic_0001>

<llo_original>
// kernel: tpu_custom_call.1
$region0: #{tpu_custom_call.1}
  #allocation0 [shape = 'u32[]', space=smem, size = 0x4, offset = 0x4, fixed_abs, tag = 'smem constant byte address 0x4 - core index']
  #allocation1 [shape = 'u32[144,128]{1,0:T(1,128)}', space=vmem, size = 0x12000, scoped, tag = 'internal scratch']
  #allocation2 [shape = 'f32[8,128]{1,0:T(8,128)}', space=vmem, size = 0x1000, scoped, tag = 'scratch operand']
  %s0 = inlined_call_operand.hbm [shape: f32[16,128], index: 0, kind: input, shape index: {}]
  %s1 = inlined_call_operand.hbm [shape: f32[2,1,8], index: 1, kind: input, shape index: {}]
  %s2 = inlined_call_operand.hbm [shape: f32[1,128], index: 2, kind: input, shape index: {}]
  %s3 = inlined_call_operand.hbm [shape: f32[1,128], index: 3, kind: input, shape index: {}]
  %s4 = inlined_call_operand.hbm [shape: bf16[2,128,384], index: 4, kind: input, shape index: {}]
  %s5 = inlined_call_operand.vmem [shape: f32[2,1,384], index: 5, kind: input, shape index: {}]
  %s6 = inlined_call_operand.hbm [shape: bf16[2,128,128], index: 6, kind: input, shape index: {}]
  %s7 = inlined_call_operand.vmem [shape: f32[2,1,128], index: 7, kind: input, shape index: {}]
  %s8 = inlined_call_operand.vmem [shape: f32[2,1,128], index: 8, kind: input, shape index: {}]
  %s9 = inlined_call_operand.vmem [shape: f32[2,1,128], index: 9, kind: input, shape index: {}]
  %s10 = inlined_call_operand.hbm [shape: bf16[2,128,512], index: 10, kind: input, shape index: {}]
  %s11 = inlined_call_operand.vmem [shape: f32[2,1,512], index: 11, kind: input, shape index: {}]
  %s12 = inlined_call_operand.hbm [shape: bf16[2,512,128], index: 12, kind: input, shape index: {}]
  %s13 = inlined_call_operand.vmem [shape: f32[2,1,128], index: 13, kind: input, shape index: {}]
  %s14 = inlined_call_operand.vmem [shape: f32[2,1,128], index: 14, kind: input, shape index: {}]
  %s15 = inlined_call_operand.vmem [shape: f32[2,1,128], index: 15, kind: input, shape index: {}]
  %s16 = inlined_call_operand.hbm [shape: f32[16,128], index: 16, kind: output, shape index: {}]
  %s17 = sld [smem:[#allocation0]]
  $region137: #{tpu_custom_call.1} parent=0
    _
  %s19 = ssub.s32 1, %s17
  %s20 = scalar_select 0, %s19, %s17
  $region1: #{tpu_custom_call.1} parent=0
    #allocation3 [shape = 'u8[8192]{0}', space=vmem, size = 0x2000, scoped, tag = 'input window, operand 0']
    #allocation4 [shape = 's32[2]{0}', space=sflag, size = 0x8, scoped, tag = 'scoped memory for tpu_custom_call.1']
    #allocation5 [shape = 's32[2]{0}', space=sflag, size = 0x8, scoped, tag = 'scoped memory for tpu_custom_call.1']
    #allocation6 [shape = 'u8[1024]{0}', space=vmem, size = 0x400, scoped, tag = 'input window, operand 1']
    #allocation7 [shape = 's32[2]{0}', space=sflag, size = 0x8, scoped, tag = 'scoped memory for tpu_custom_call.1']
    #allocation8 [shape = 'u8[512]{0}', space=vmem, size = 0x400, scoped, tag = 'input window, operand 2, single buffered']
    #allocation9 [shape = 'u8[512]{0}', space=vmem, size = 0x400, scoped, tag = 'input window, operand 3, single buffered']
    #allocation10 [shape = 's32[1]{0}', space=sflag, size = 0x4, scoped, tag = 'scoped memory for tpu_custom_call.1']
    #allocation11 [shape = 'u8[196608]{0}', space=vmem, size = 0x30000, scoped, tag = 'input window, operand 4']
    #allocation12 [shape = 'u8[65536]{0}', space=vmem, size = 0x10000, scoped, tag = 'input window, operand 6']
    #allocation13 [shape = 'u8[262144]{0}', space=vmem, size = 0x40000, scoped, tag = 'input window, operand 10']
    #allocation14 [shape = 'u8[262144]{0}', space=vmem, size = 0x40000, scoped, tag = 'input window, operand 12']
    #allocation15 [shape = 'u8[8192]{0}', space=vmem, size = 0x2000, scoped, tag = 'output window, operand 0']
    %21 = vsyncpa [#allocation4], 0
    %s22 = scalar_lea.sflag [#allocation4], 1
    %23 = vsyncpa %s22, 0
    %24 = vsyncpa [#allocation7], 0
    %s25 = scalar_lea.sflag [#allocation7], 1
    %26 = vsyncpa %s25, 0
    %27 = vsyncpa [#allocation10], 0
    %28 = vsyncpa [#allocation5], 0
    %s29 = scalar_lea.sflag [#allocation5], 1
    %30 = vsyncpa %s29, 0
    loop: start=0, step=1, limit=6
    $region2: #{tpu_custom_call.1} parent=1 // loop_pre_header
      _
    $region3: #{tpu_custom_call.1} parent=1 // loop_header
      %s32 = sphi 0, %s36
      %p33 = scmp.ge.s32.totalorder %s32, 6
      %s39 = sphi 0, %s51
      %s40 = sphi 0, %s47
      %s41 = sphi 0, %s39
      %s42 = sphi 0, %s40
      %s43 = sphi 0, %s41
      %s44 = sphi 0, %s42
      %s54 = sphi 0, %s56
      %s57 = sphi 0, %s54
      %s58 = sphi 0, %s57
      %s74 = sphi 0, %s58
      %s80 = sphi 0, %s82
      %s83 = sphi 0, %s80
      %s84 = sphi 0, %s83
      %s100 = sphi 0, %s84
      %s104 = sphi 0, %s104
      %s106 = sphi 0, %s104
      %s107 = sphi 0, %s106
      %s121 = sphi 0, %s107
      %s125 = sphi 0, %s125
      %s127 = sphi 0, %s125
      %s128 = sphi 0, %s127
      %s142 = sphi 0, %s128
      %s148 = sphi 0, %s150
      %s151 = sphi 0, %s148
      %s152 = sphi 0, %s151
      %s168 = sphi 0, %s152
      %s174 = sphi 0, %s176
      %s177 = sphi 0, %s174
      %s178 = sphi 0, %s177
      %s194 = sphi 0, %s178
      %s200 = sphi 0, %s202
      %s203 = sphi 0, %s200
      %s204 = sphi 0, %s203
      %s220 = sphi 0, %s204
      %s226 = sphi 0, %s228
      %s229 = sphi 0, %s226
      %s230 = sphi 0, %s229
      %s246 = sphi 0, %s230
      %s252 = sphi 0, %s254
      %s255 = sphi 0, %s252
      %s256 = sphi 0, %s255
      %s272 = sphi 0, %s256
      %s278 = sphi 0, %s280
      %s281 = sphi 0, %s278
      %s282 = sphi 0, %s281
      %s298 = sphi 0, %s282
      %s304 = sphi 0, %s306
      %s307 = sphi 0, %s304
      %s308 = sphi 0, %s307
      %s324 = sphi 0, %s308
      %s330 = sphi 0, %s332
      %s333 = sphi 0, %s330
      %s334 = sphi 0, %s333
      %s350 = sphi 0, %s334
      %s356 = sphi 0, %s358
      %s359 = sphi 0, %s356
      %s360 = sphi 0, %s359
      %s376 = sphi 0, %s360
      %s382 = sphi 0, %s384
      %s385 = sphi 0, %s382
      %s386 = sphi 0, %s385
      %s402 = sphi 0, %s386
      %s408 = sphi 0, %s410
      %s411 = sphi 0, %s408
      %s412 = sphi 0, %s411
      %s428 = sphi 0, %s412
      %s434 = sphi 0, %s436
      %s437 = sphi 0, %s434
      %s438 = sphi 0, %s437
      %s454 = sphi 0, %s438
      %s460 = sphi 0, %s462
      %s463 = sphi 0, %s460
      %s464 = sphi 0, %s463
      %s480 = sphi 0, %s464
    $region4: #{tpu_custom_call.1} parent=1 // loop_header_branch
      %35 = sbr.rel (%p33) target = $region8
    $region5: #{tpu_custom_call.1} parent=1 // loop_body
      %s37 = ssub.s32 %s32, 1
      %s38 = ssub.s32 %s32, 2
      %s45 = sadd.s32 1, %s40
      %p46 = scmp.ge.s32.totalorder %s45, 2
      %s47 = scalar_select %p46, 0, %s45
      %s48 = sadd.s32 1, %s39
      %s49 = scalar_select %p46, %s48, %s39
      %p50 = scmp.ge.s32.totalorder %s49, 2
      %s51 = scalar_select %p50, 0, %s49
      %s52 = ssub.s32 %s39, %s51
      %p53 = scmp.eq.s32.totalorder %s52, 0
      %s55 = sadd.s32 %s54, 1
      %s56 = scalar_select %p53, %s54, %s55
      %p59 = pneg %p53
      %p60 = scmp.eq.s32.totalorder %s32, 3
      %p61 = por %p59, %p60
      %p62 = scmp.ne.s32.totalorder %s54, %s57
      %p63 = scmp.eq.s32.totalorder %s32, 0
      %p64 = por %p62, %p63
      %p65 = scmp.ne.s32.totalorder %s54, %s57
      %p66 = scmp.eq.s32.totalorder %s37, 3
      %p67 = por %p65, %p66
      %p68 = scmp.ne.s32.totalorder %s57, %s58
      %p69 = scmp.eq.s32.totalorder %s37, 0
      %p70 = por %p68, %p69
      %p71 = scmp.ne.s32.totalorder %s57, %s58
      %p72 = scmp.eq.s32.totalorder %s38, 3
      %p73 = por %p71, %p72
      %p75 = scmp.ne.s32.totalorder %s58, %s74
      %p76 = scmp.eq.s32.totalorder %s38, 0
      %p77 = por %p75, %p76
      %s78 = ssub.s32 %s39, %s51
      %p79 = scmp.eq.s32.totalorder %s78, 0
      %s81 = sadd.s32 %s80, 1
      %s82 = scalar_select %p79, %s80, %s81
      %p85 = pneg %p79
      %p86 = scmp.eq.s32.totalorder %s32, 3
      %p87 = por %p85, %p86
      %p88 = scmp.ne.s32.totalorder %s80, %s83
      %p89 = scmp.eq.s32.totalorder %s32, 0
      %p90 = por %p88, %p89
      %p91 = scmp.ne.s32.totalorder %s80, %s83
      %p92 = scmp.eq.s32.totalorder %s37, 3
      %p93 = por %p91, %p92
      %p94 = scmp.ne.s32.totalorder %s83, %s84
      %p95 = scmp.eq.s32.totalorder %s37, 0
      %p96 = por %p94, %p95
      %p97 = scmp.ne.s32.totalorder %s83, %s84
      %p98 = scmp.eq.s32.totalorder %s38, 3
      %p99 = por %p97, %p98
      %p101 = scmp.ne.s32.totalorder %s84, %s100
      %p102 = scmp.eq.s32.totalorder %s38, 0
      %p103 = por %p101, %p102
      %s105 = sadd.s32 %s104, 1
      %p108 = scmp.eq.s32.totalorder %s32, 3
      %p109 = scmp.ne.s32.totalorder %s104, %s106
      %p110 = scmp.eq.s32.totalorder %s32, 0
      %p111 = por %p109, %p110
      %p112 = scmp.ne.s32.totalorder %s104, %s106
      %p113 = scmp.eq.s32.totalorder %s37, 3
      %p114 = por %p112, %p113
      %p115 = scmp.ne.s32.totalorder %s106, %s107
      %p116 = scmp.eq.s32.totalorder %s37, 0
      %p117 = por %p115, %p116
      %p118 = scmp.ne.s32.totalorder %s106, %s107
      %p119 = scmp.eq.s32.totalorder %s38, 3
      %p120 = por %p118, %p119
      %p122 = scmp.ne.s32.totalorder %s107, %s121
      %p123 = scmp.eq.s32.totalorder %s38, 0
      %p124 = por %p122, %p123
      %s126 = sadd.s32 %s125, 1
      %p129 = scmp.eq.s32.totalorder %s32, 3
      %p130 = scmp.ne.s32.totalorder %s125, %s127
      %p131 = scmp.eq.s32.totalorder %s32, 0
      %p132 = por %p130, %p131
      %p133 = scmp.ne.s32.totalorder %s125, %s127
      %p134 = scmp.eq.s32.totalorder %s37, 3
      %p135 = por %p133, %p134
      %p136 = scmp.ne.s32.totalorder %s127, %s128
      %p137 = scmp.eq.s32.totalorder %s37, 0
      %p138 = por %p136, %p137
      %p139 = scmp.ne.s32.totalorder %s127, %s128
      %p140 = scmp.eq.s32.totalorder %s38, 3
      %p141 = por %p139, %p140
      %p143 = scmp.ne.s32.totalorder %s128, %s142
      %p144 = scmp.eq.s32.totalorder %s38, 0
      %p145 = por %p143, %p144
      %s146 = ssub.s32 %s40, %s47
      %p147 = scmp.eq.s32.totalorder %s146, 0
      %s149 = sadd.s32 %s148, 1
      %s150 = scalar_select %p147, %s148, %s149
      %p153 = pneg %p147
      %p154 = scmp.eq.s32.totalorder %s32, 3
      %p155 = por %p153, %p154
      %p156 = scmp.ne.s32.totalorder %s148, %s151
      %p157 = scmp.eq.s32.totalorder %s32, 0
      %p158 = por %p156, %p157
      %p159 = scmp.ne.s32.totalorder %s148, %s151
      %p160 = scmp.eq.s32.totalorder %s37, 3
      %p161 = por %p159, %p160
      %p162 = scmp.ne.s32.totalorder %s151, %s152
      %p163 = scmp.eq.s32.totalorder %s37, 0
      %p164 = por %p162, %p163
      %p165 = scmp.ne.s32.totalorder %s151, %s152
      %p166 = scmp.eq.s32.totalorder %s38, 3
      %p167 = por %p165, %p166
      %p169 = scmp.ne.s32.totalorder %s152, %s168
      %p170 = scmp.eq.s32.totalorder %s38, 0
      %p171 = por %p169, %p170
      %s172 = ssub.s32 %s40, %s47
      %p173 = scmp.eq.s32.totalorder %s172, 0
      %s175 = sadd.s32 %s174, 1
      %s176 = scalar_select %p173, %s174, %s175
      %p179 = pneg %p173
      %p180 = scmp.eq.s32.totalorder %s32, 3
      %p181 = por %p179, %p180
      %p182 = scmp.ne.s32.totalorder %s174, %s177
      %p183 = scmp.eq.s32.totalorder %s32, 0
      %p184 = por %p182, %p183
      %p185 = scmp.ne.s32.totalorder %s174, %s177
      %p186 = scmp.eq.s32.totalorder %s37, 3
      %p187 = por %p185, %p186
      %p188 = scmp.ne.s32.totalorder %s177, %s178
      %p189 = scmp.eq.s32.totalorder %s37, 0
      %p190 = por %p188, %p189
      %p191 = scmp.ne.s32.totalorder %s177, %s178
      %p192 = scmp.eq.s32.totalorder %s38, 3
      %p193 = por %p191, %p192
      %p195 = scmp.ne.s32.totalorder %s178, %s194
      %p196 = scmp.eq.s32.totalorder %s38, 0
      %p197 = por %p195, %p196
      %s198 = ssub.s32 %s40, %s47
      %p199 = scmp.eq.s32.totalorder %s198, 0
      %s201 = sadd.s32 %s200, 1
      %s202 = scalar_select %p199, %s200, %s201
      %p205 = pneg %p199
      %p206 = scmp.eq.s32.totalorder %s32, 3
      %p207 = por %p205, %p206
      %p208 = scmp.ne.s32.totalorder %s200, %s203
      %p209 = scmp.eq.s32.totalorder %s32, 0
      %p210 = por %p208, %p209
      %p211 = scmp.ne.s32.totalorder %s200, %s203
      %p212 = scmp.eq.s32.totalorder %s37, 3
      %p213 = por %p211, %p212
      %p214 = scmp.ne.s32.totalorder %s203, %s204
      %p215 = scmp.eq.s32.totalorder %s37, 0
      %p216 = por %p214, %p215
      %p217 = scmp.ne.s32.totalorder %s203, %s204
      %p218 = scmp.eq.s32.totalorder %s38, 3
      %p219 = por %p217, %p218
      %p221 = scmp.ne.s32.totalorder %s204, %s220
      %p222 = scmp.eq.s32.totalorder %s38, 0
      %p223 = por %p221, %p222
      %s224 = ssub.s32 %s40, %s47
      %p225 = scmp.eq.s32.totalorder %s224, 0
      %s227 = sadd.s32 %s226, 1
      %s228 = scalar_select %p225, %s226, %s227
      %p231 = pneg %p225
      %p232 = scmp.eq.s32.totalorder %s32, 3
      %p233 = por %p231, %p232
      %p234 = scmp.ne.s32.totalorder %s226, %s229
      %p235 = scmp.eq.s32.totalorder %s32, 0
      %p236 = por %p234, %p235
      %p237 = scmp.ne.s32.totalorder %s226, %s229
      %p238 = scmp.eq.s32.totalorder %s37, 3
      %p239 = por %p237, %p238
      %p240 = scmp.ne.s32.totalorder %s229, %s230
      %p241 = scmp.eq.s32.totalorder %s37, 0
      %p242 = por %p240, %p241
      %p243 = scmp.ne.s32.totalorder %s229, %s230
      %p244 = scmp.eq.s32.totalorder %s38, 3
      %p245 = por %p243, %p244
      %p247 = scmp.ne.s32.totalorder %s230, %s246
      %p248 = scmp.eq.s32.totalorder %s38, 0
      %p249 = por %p247, %p248
      %s250 = ssub.s32 %s40, %s47
      %p251 = scmp.eq.s32.totalorder %s250, 0
      %s253 = sadd.s32 %s252, 1
      %s254 = scalar_select %p251, %s252, %s253
      %p257 = pneg %p251
      %p258 = scmp.eq.s32.totalorder %s32, 3
      %p259 = por %p257, %p258
      %p260 = scmp.ne.s32.totalorder %s252, %s255
      %p261 = scmp.eq.s32.totalorder %s32, 0
      %p262 = por %p260, %p261
      %p263 = scmp.ne.s32.totalorder %s252, %s255
      %p264 = scmp.eq.s32.totalorder %s37, 3
      %p265 = por %p263, %p264
      %p266 = scmp.ne.s32.totalorder %s255, %s256
      %p267 = scmp.eq.s32.totalorder %s37, 0
      %p268 = por %p266, %p267
      %p269 = scmp.ne.s32.totalorder %s255, %s256
      %p270 = scmp.eq.s32.totalorder %s38, 3
      %p271 = por %p269, %p270
      %p273 = scmp.ne.s32.totalorder %s256, %s272
      %p274 = scmp.eq.s32.totalorder %s38, 0
      %p275 = por %p273, %p274
      %s276 = ssub.s32 %s40, %s47
      %p277 = scmp.eq.s32.totalorder %s276, 0
      %s279 = sadd.s32 %s278, 1
      %s280 = scalar_select %p277, %s278, %s279
      %p283 = pneg %p277
      %p284 = scmp.eq.s32.totalorder %s32, 3
      %p285 = por %p283, %p284
      %p286 = scmp.ne.s32.totalorder %s278, %s281
      %p287 = scmp.eq.s32.totalorder %s32, 0
      %p288 = por %p286, %p287
      %p289 = scmp.ne.s32.totalorder %s278, %s281
      %p290 = scmp.eq.s32.totalorder %s37, 3
      %p291 = por %p289, %p290
      %p292 = scmp.ne.s32.totalorder %s281, %s282
      %p293 = scmp.eq.s32.totalorder %s37, 0
      %p294 = por %p292, %p293
      %p295 = scmp.ne.s32.totalorder %s281, %s282
      %p296 = scmp.eq.s32.totalorder %s38, 3
      %p297 = por %p295, %p296
      %p299 = scmp.ne.s32.totalorder %s282, %s298
      %p300 = scmp.eq.s32.totalorder %s38, 0
      %p301 = por %p299, %p300
      %s302 = ssub.s32 %s40, %s47
      %p303 = scmp.eq.s32.totalorder %s302, 0
      %s305 = sadd.s32 %s304, 1
      %s306 = scalar_select %p303, %s304, %s305
      %p309 = pneg %p303
      %p310 = scmp.eq.s32.totalorder %s32, 3
      %p311 = por %p309, %p310
      %p312 = scmp.ne.s32.totalorder %s304, %s307
      %p313 = scmp.eq.s32.totalorder %s32, 0
      %p314 = por %p312, %p313
      %p315 = scmp.ne.s32.totalorder %s304, %s307
      %p316 = scmp.eq.s32.totalorder %s37, 3
      %p317 = por %p315, %p316
      %p318 = scmp.ne.s32.totalorder %s307, %s308
      %p319 = scmp.eq.s32.totalorder %s37, 0
      %p320 = por %p318, %p319
      %p321 = scmp.ne.s32.totalorder %s307, %s308
      %p322 = scmp.eq.s32.totalorder %s38, 3
      %p323 = por %p321, %p322
      %p325 = scmp.ne.s32.totalorder %s308, %s324
      %p326 = scmp.eq.s32.totalorder %s38, 0
      %p327 = por %p325, %p326
      %s328 = ssub.s32 %s40, %s47
      %p329 = scmp.eq.s32.totalorder %s328, 0
      %s331 = sadd.s32 %s330, 1
      %s332 = scalar_select %p329, %s330, %s331
      %p335 = pneg %p329
      %p336 = scmp.eq.s32.totalorder %s32, 3
      %p337 = por %p335, %p336
      %p338 = scmp.ne.s32.totalorder %s330, %s333
      %p339 = scmp.eq.s32.totalorder %s32, 0
      %p340 = por %p338, %p339
      %p341 = scmp.ne.s32.totalorder %s330, %s333
      %p342 = scmp.eq.s32.totalorder %s37, 3
      %p343 = por %p341, %p342
      %p344 = scmp.ne.s32.totalorder %s333, %s334
      %p345 = scmp.eq.s32.totalorder %s37, 0
      %p346 = por %p344, %p345
      %p347 = scmp.ne.s32.totalorder %s333, %s334
      %p348 = scmp.eq.s32.totalorder %s38, 3
      %p349 = por %p347, %p348
      %p351 = scmp.ne.s32.totalorder %s334, %s350
      %p352 = scmp.eq.s32.totalorder %s38, 0
      %p353 = por %p351, %p352
      %s354 = ssub.s32 %s40, %s47
      %p355 = scmp.eq.s32.totalorder %s354, 0
      %s357 = sadd.s32 %s356, 1
      %s358 = scalar_select %p355, %s356, %s357
      %p361 = pneg %p355
      %p362 = scmp.eq.s32.totalorder %s32, 3
      %p363 = por %p361, %p362
      %p364 = scmp.ne.s32.totalorder %s356, %s359
      %p365 = scmp.eq.s32.totalorder %s32, 0
      %p366 = por %p364, %p365
      %p367 = scmp.ne.s32.totalorder %s356, %s359
      %p368 = scmp.eq.s32.totalorder %s37, 3
      %p369 = por %p367, %p368
      %p370 = scmp.ne.s32.totalorder %s359, %s360
      %p371 = scmp.eq.s32.totalorder %s37, 0
      %p372 = por %p370, %p371
      %p373 = scmp.ne.s32.totalorder %s359, %s360
      %p374 = scmp.eq.s32.totalorder %s38, 3
      %p375 = por %p373, %p374
      %p377 = scmp.ne.s32.totalorder %s360, %s376
      %p378 = scmp.eq.s32.totalorder %s38, 0
      %p379 = por %p377, %p378
      %s380 = ssub.s32 %s40, %s47
      %p381 = scmp.eq.s32.totalorder %s380, 0
      %s383 = sadd.s32 %s382, 1
      %s384 = scalar_select %p381, %s382, %s383
      %p387 = pneg %p381
      %p388 = scmp.eq.s32.totalorder %s32, 3
      %p389 = por %p387, %p388
      %p390 = scmp.ne.s32.totalorder %s382, %s385
      %p391 = scmp.eq.s32.totalorder %s32, 0
      %p392 = por %p390, %p391
      %p393 = scmp.ne.s32.totalorder %s382, %s385
      %p394 = scmp.eq.s32.totalorder %s37, 3
      %p395 = por %p393, %p394
      %p396 = scmp.ne.s32.totalorder %s385, %s386
      %p397 = scmp.eq.s32.totalorder %s37, 0
      %p398 = por %p396, %p397
      %p399 = scmp.ne.s32.totalorder %s385, %s386
      %p400 = scmp.eq.s32.totalorder %s38, 3
      %p401 = por %p399, %p400
      %p403 = scmp.ne.s32.totalorder %s386, %s402
      %p404 = scmp.eq.s32.totalorder %s38, 0
      %p405 = por %p403, %p404
      %s406 = ssub.s32 %s40, %s47
      %p407 = scmp.eq.s32.totalorder %s406, 0
      %s409 = sadd.s32 %s408, 1
      %s410 = scalar_select %p407, %s408, %s409
      %p413 = pneg %p407
      %p414 = scmp.eq.s32.totalorder %s32, 3
      %p415 = por %p413, %p414
      %p416 = scmp.ne.s32.totalorder %s408, %s411
      %p417 = scmp.eq.s32.totalorder %s32, 0
      %p418 = por %p416, %p417
      %p419 = scmp.ne.s32.totalorder %s408, %s411
      %p420 = scmp.eq.s32.totalorder %s37, 3
      %p421 = por %p419, %p420
      %p422 = scmp.ne.s32.totalorder %s411, %s412
      %p423 = scmp.eq.s32.totalorder %s37, 0
      %p424 = por %p422, %p423
      %p425 = scmp.ne.s32.totalorder %s411, %s412
      %p426 = scmp.eq.s32.totalorder %s38, 3
      %p427 = por %p425, %p426
      %p429 = scmp.ne.s32.totalorder %s412, %s428
      %p430 = scmp.eq.s32.totalorder %s38, 0
      %p431 = por %p429, %p430
      %s432 = ssub.s32 %s40, %s47
      %p433 = scmp.eq.s32.totalorder %s432, 0
      %s435 = sadd.s32 %s434, 1
      %s436 = scalar_select %p433, %s434, %s435
      %p439 = pneg %p433
      %p440 = scmp.eq.s32.totalorder %s32, 3
      %p441 = por %p439, %p440
      %p442 = scmp.ne.s32.totalorder %s434, %s437
      %p443 = scmp.eq.s32.totalorder %s32, 0
      %p444 = por %p442, %p443
      %p445 = scmp.ne.s32.totalorder %s434, %s437
      %p446 = scmp.eq.s32.totalorder %s37, 3
      %p447 = por %p445, %p446
      %p448 = scmp.ne.s32.totalorder %s437, %s438
      %p449 = scmp.eq.s32.totalorder %s37, 0
      %p450 = por %p448, %p449
      %p451 = scmp.ne.s32.totalorder %s437, %s438
      %p452 = scmp.eq.s32.totalorder %s38, 3
      %p453 = por %p451, %p452
      %p455 = scmp.ne.s32.totalorder %s438, %s454
      %p456 = scmp.eq.s32.totalorder %s38, 0
      %p457 = por %p455, %p456
      %s458 = ssub.s32 %s39, %s51
      %p459 = scmp.eq.s32.totalorder %s458, 0
      %s461 = sadd.s32 %s460, 1
      %s462 = scalar_select %p459, %s460, %s461
      %p465 = pneg %p459
      %p466 = scmp.eq.s32.totalorder %s32, 3
      %p467 = por %p465, %p466
      %p468 = scmp.ne.s32.totalorder %s460, %s463
      %p469 = scmp.eq.s32.totalorder %s32, 0
      %p470 = por %p468, %p469
      %p471 = scmp.ne.s32.totalorder %s460, %s463
      %p472 = scmp.eq.s32.totalorder %s37, 3
      %p473 = por %p471, %p472
      %p474 = scmp.ne.s32.totalorder %s463, %s464
      %p475 = scmp.eq.s32.totalorder %s37, 0
      %p476 = por %p474, %p475
      %p477 = scmp.ne.s32.totalorder %s463, %s464
      %p478 = scmp.eq.s32.totalorder %s38, 3
      %p479 = por %p477, %p478
      %p481 = scmp.ne.s32.totalorder %s464, %s480
      %p482 = scmp.eq.s32.totalorder %s38, 0
      %p483 = por %p481, %p482
      %p484 = scmp.le.s32.totalorder 1, %s32
      %p485 = scmp.lt.s32.totalorder %s32, 5
      %p486 = pnand %p484, %p485
      %p487 = pneg %p486
      // Predicated region
      $region9: #{tpu_custom_call.1} parent=5 // pred_check
        _
      $region10: #{tpu_custom_call.1} parent=5 // pred_check_branch
        %489 = sbr.rel (%p486) target = $region12
      $region11: #{tpu_custom_call.1} parent=5 // pred_region
        %s490 = ssub.s32 %s32, 1
        // Predicated region
        $region13: #{tpu_custom_call.1} parent=11 // pred_check
          %p491 = pneg %p117
        $region14: #{tpu_custom_call.1} parent=11 // pred_check_branch
          %493 = sbr.rel (%p491) target = $region16
        $region15: #{tpu_custom_call.1} parent=11 // pred_region
          %s495 = ssub.s32 16, 16
          %496 = vsyncadd [#allocation7], %s495
          %s498 = sshll.u32 [#allocation8], 4
          %s499 = int_to_ptr.vmem [resolvable:$true] %s498
          %501 = dma.hbm_to_vmem [thread:$0]  %s2, 16, %s499, [#allocation7]
        $region16: #{tpu_custom_call.1} parent=11 // pred_fallthru
          _
        // Predicated region
        $region17: #{tpu_custom_call.1} parent=11 // pred_check
          %p502 = pneg %p138
        $region18: #{tpu_custom_call.1} parent=11 // pred_check_branch
          %504 = sbr.rel (%p502) target = $region20
        $region19: #{tpu_custom_call.1} parent=11 // pred_region
          %s506 = ssub.s32 16, 16
          %507 = vsyncadd [#allocation10], %s506
          %s509 = sshll.u32 [#allocation9], 4
          %s510 = int_to_ptr.vmem [resolvable:$true] %s509
          %512 = dma.hbm_to_vmem [thread:$0]  %s3, 16, %s510, [#allocation10]
        $region20: #{tpu_custom_call.1} parent=11 // pred_fallthru
          _
      $region12: #{tpu_custom_call.1} parent=5 // pred_fallthru
        _
      %p513 = scmp.lt.s32.totalorder %s32, 4
      // Predicated region
      $region21: #{tpu_custom_call.1} parent=5 // pred_check
        %p514 = pneg %p513
      $region22: #{tpu_custom_call.1} parent=5 // pred_check_branch
        %516 = sbr.rel (%p514) target = $region24
      $region23: #{tpu_custom_call.1} parent=5 // pred_region
        // Predicated region
        $region25: #{tpu_custom_call.1} parent=23 // pred_check
          %p517 = pneg %p64
        $region26: #{tpu_custom_call.1} parent=23 // pred_check_branch
          %519 = sbr.rel (%p517) target = $region28
        $region27: #{tpu_custom_call.1} parent=23 // pred_region
          %s520 = sand.u32 %s32, 1
          %s521 = scalar_lea.sflag [#allocation4], %s520
          %s522 = sand.u32 %s54, 1
          %s523 = smul.addr %s522, 8
          %s524 = scalar_lea.vmem [#allocation3], %s523
          %s526 = ssub.s32 128, 128
          %527 = vsyncadd %s521, %s526
          %s528 = smul.addr %s39, 128
          %s529 = scalar_lea.hbm %s0, %s528
          %s531 = sshll.u32 %s524, 4
          %s532 = int_to_ptr.vmem [resolvable:$true] %s531
          %534 = dma.hbm_to_vmem [thread:$0]  %s529, 128, %s532, %s521
        $region28: #{tpu_custom_call.1} parent=23 // pred_fallthru
          _
        // Predicated region
        $region29: #{tpu_custom_call.1} parent=23 // pred_check
          %p535 = pneg %p90
        $region30: #{tpu_custom_call.1} parent=23 // pred_check_branch
          %537 = sbr.rel (%p535) target = $region32
        $region31: #{tpu_custom_call.1} parent=23 // pred_region
          %s538 = sand.u32 %s32, 1
          %s539 = scalar_lea.sflag [#allocation7], %s538
          %s540 = sand.u32 %s80, 1
          %s541 = scalar_lea.vmem [#allocation6], %s540
          %s543 = ssub.s32 16, 16
          %544 = vsyncadd %s539, %s543
          %s545 = smul.addr %s39, 16
          %s546 = scalar_lea.hbm %s1, %s545
          %s548 = sshll.u32 %s541, 4
          %s549 = int_to_ptr.vmem [resolvable:$true] %s548
          %551 = dma.hbm_to_vmem [thread:$0]  %s546, 16, %s549, %s539
        $region32: #{tpu_custom_call.1} parent=23 // pred_fallthru
          _
        // Predicated region
        $region33: #{tpu_custom_call.1} parent=23 // pred_check
          %p552 = pneg %p158
        $region34: #{tpu_custom_call.1} parent=23 // pred_check_branch
          %554 = sbr.rel (%p552) target = $region36
        $region35: #{tpu_custom_call.1} parent=23 // pred_region
          %s555 = sand.u32 %s32, 1
          %s556 = scalar_lea.sflag [#allocation4], %s555
          %s557 = sand.u32 %s148, 1
          %s558 = smul.addr %s557, 192
          %s559 = scalar_lea.vmem [#allocation11], %s558
          %s561 = ssub.s32 3072, 3072
          %562 = vsyncadd %s556, %s561
          %s563 = smul.addr %s40, 48
          %s564 = smul.addr %s563, 64
          %s565 = scalar_lea.hbm %s4, %s564
          %s566 = sshll.u32 %s559, 4
          %s567 = int_to_ptr.vmem [resolvable:$true] %s566
          %572 = dma.hbm_to_vmem [thread:$0]  %s565, 3072, %s567, %s556, 192, 192, 12
        $region36: #{tpu_custom_call.1} parent=23 // pred_fallthru
          _
        // Predicated region
        $region37: #{tpu_custom_call.1} parent=23 // pred_check
          %p573 = pneg %p184
        $region38: #{tpu_custom_call.1} parent=23 // pred_check_branch
          %575 = sbr.rel (%p573) target = $region40
        $region39: #{tpu_custom_call.1} parent=23 // pred_region
          %p576 = scmp.lt.s32.totalorder %s40, 1
          %s577 = scalar_select %p576, %s40, 1
          %s578 = smul.addr %s577, 3
          %s579 = scalar_lea.vmem %s5, %s578
        $region40: #{tpu_custom_call.1} parent=23 // pred_fallthru
          _
        // Predicated region
        $region41: #{tpu_custom_call.1} parent=23 // pred_check
          %p580 = pneg %p210
        $region42: #{tpu_custom_call.1} parent=23 // pred_check_branch
          %582 = sbr.rel (%p580) target = $region44
        $region43: #{tpu_custom_call.1} parent=23 // pred_region
          %s583 = sand.u32 %s32, 1
          %s584 = scalar_lea.sflag [#allocation7], %s583
          %s585 = sand.u32 %s200, 1
          %s586 = smul.addr %s585, 64
          %s587 = scalar_lea.vmem [#allocation12], %s586
          %s589 = ssub.s32 1024, 1024
          %590 = vsyncadd %s584, %s589
          %s591 = smul.addr %s40, 16
          %s592 = smul.addr %s591, 64
          %s593 = scalar_lea.hbm %s6, %s592
          %s594 = sshll.u32 %s587, 4
          %s595 = int_to_ptr.vmem [resolvable:$true] %s594
          %600 = dma.hbm_to_vmem [thread:$0]  %s593, 1024, %s595, %s584, 64, 64, 4
        $region44: #{tpu_custom_call.1} parent=23 // pred_fallthru
          _
        // Predicated region
        $region45: #{tpu_custom_call.1} parent=23 // pred_check
          %p601 = pneg %p236
        $region46: #{tpu_custom_call.1} parent=23 // pred_check_branch
          %603 = sbr.rel (%p601) target = $region48
        $region47: #{tpu_custom_call.1} parent=23 // pred_region
          %p604 = scmp.lt.s32.totalorder %s40, 1
          %s605 = scalar_select %p604, %s40, 1
          %s606 = scalar_lea.vmem %s7, %s605
        $region48: #{tpu_custom_call.1} parent=23 // pred_fallthru
          _
        // Predicated region
        $region49: #{tpu_custom_call.1} parent=23 // pred_check
          %p607 = pneg %p262
        $region50: #{tpu_custom_call.1} parent=23 // pred_check_branch
          %609 = sbr.rel (%p607) target = $region52
        $region51: #{tpu_custom_call.1} parent=23 // pred_region
          %p610 = scmp.lt.s32.totalorder %s40, 1
          %s611 = scalar_select %p610, %s40, 1
          %s612 = scalar_lea.vmem %s8, %s611
        $region52: #{tpu_custom_call.1} parent=23 // pred_fallthru
          _
        // Predicated region
        $region53: #{tpu_custom_call.1} parent=23 // pred_check
          %p613 = pneg %p288
        $region54: #{tpu_custom_call.1} parent=23 // pred_check_branch
          %615 = sbr.rel (%p613) target = $region56
        $region55: #{tpu_custom_call.1} parent=23 // pred_region
          %p616 = scmp.lt.s32.totalorder %s40, 1
          %s617 = scalar_select %p616, %s40, 1
          %s618 = scalar_lea.vmem %s9, %s617
        $region56: #{tpu_custom_call.1} parent=23 // pred_fallthru
          _
        // Predicated region
        $region57: #{tpu_custom_call.1} parent=23 // pred_check
          %p619 = pneg %p314
        $region58: #{tpu_custom_call.1} parent=23 // pred_check_branch
          %621 = sbr.rel (%p619) target = $region60
        $region59: #{tpu_custom_call.1} parent=23 // pred_region
          %s622 = sand.u32 %s32, 1
          %s623 = scalar_lea.sflag [#allocation4], %s622
          %s624 = sand.u32 %s304, 1
          %s625 = smul.addr %s624, 256
          %s626 = scalar_lea.vmem [#allocation13], %s625
          %s628 = ssub.s32 4096, 4096
          %629 = vsyncadd %s623, %s628
          %s630 = smul.addr %s40, 64
          %s631 = smul.addr %s630, 64
          %s632 = scalar_lea.hbm %s10, %s631
          %s633 = sshll.u32 %s626, 4
          %s634 = int_to_ptr.vmem [resolvable:$true] %s633
          %639 = dma.hbm_to_vmem [thread:$0]  %s632, 4096, %s634, %s623, 256, 256, 16
        $region60: #{tpu_custom_call.1} parent=23 // pred_fallthru
          _
        // Predicated region
        $region61: #{tpu_custom_call.1} parent=23 // pred_check
          %p640 = pneg %p340
        $region62: #{tpu_custom_call.1} parent=23 // pred_check_branch
          %642 = sbr.rel (%p640) target = $region64
        $region63: #{tpu_custom_call.1} parent=23 // pred_region
          %p643 = scmp.lt.s32.totalorder %s40, 1
          %s644 = scalar_select %p643, %s40, 1
          %s645 = smul.addr %s644, 4
          %s646 = scalar_lea.vmem %s11, %s645
        $region64: #{tpu_custom_call.1} parent=23 // pred_fallthru
          _
        // Predicated region
        $region65: #{tpu_custom_call.1} parent=23 // pred_check
          %p647 = pneg %p366
        $region66: #{tpu_custom_call.1} parent=23 // pred_check_branch
          %649 = sbr.rel (%p647) target = $region68
        $region67: #{tpu_custom_call.1} parent=23 // pred_region
          %s650 = sand.u32 %s32, 1
          %s651 = scalar_lea.sflag [#allocation7], %s650
          %s652 = sand.u32 %s356, 1
          %s653 = smul.addr %s652, 256
          %s654 = scalar_lea.vmem [#allocation14], %s653
          %s656 = ssub.s32 4096, 4096
          %657 = vsyncadd %s651, %s656
          %s658 = smul.addr %s40, 64
          %s659 = smul.addr %s658, 64
          %s660 = scalar_lea.hbm %s12, %s659
          %s661 = sshll.u32 %s654, 4
          %s662 = int_to_ptr.vmem [resolvable:$true] %s661
          %667 = dma.hbm_to_vmem [thread:$0]  %s660, 4096, %s662, %s651, 64, 64, 4
        $region68: #{tpu_custom_call.1} parent=23 // pred_fallthru
          _
        // Predicated region
        $region69: #{tpu_custom_call.1} parent=23 // pred_check
          %p668 = pneg %p392
        $region70: #{tpu_custom_call.1} parent=23 // pred_check_branch
          %670 = sbr.rel (%p668) target = $region72
        $region71: #{tpu_custom_call.1} parent=23 // pred_region
          %p671 = scmp.lt.s32.totalorder %s40, 1
          %s672 = scalar_select %p671, %s40, 1
          %s673 = scalar_lea.vmem %s13, %s672
        $region72: #{tpu_custom_call.1} parent=23 // pred_fallthru
          _
        // Predicated region
        $region73: #{tpu_custom_call.1} parent=23 // pred_check
          %p674 = pneg %p418
        $region74: #{tpu_custom_call.1} parent=23 // pred_check_branch
          %676 = sbr.rel (%p674) target = $region76
        $region75: #{tpu_custom_call.1} parent=23 // pred_region
          %p677 = scmp.lt.s32.totalorder %s40, 1
          %s678 = scalar_select %p677, %s40, 1
          %s679 = scalar_lea.vmem %s14, %s678
        $region76: #{tpu_custom_call.1} parent=23 // pred_fallthru
          _
        // Predicated region
        $region77: #{tpu_custom_call.1} parent=23 // pred_check
          %p680 = pneg %p444
        $region78: #{tpu_custom_call.1} parent=23 // pred_check_branch
          %682 = sbr.rel (%p680) target = $region80
        $region79: #{tpu_custom_call.1} parent=23 // pred_region
          %p683 = scmp.lt.s32.totalorder %s40, 1
          %s684 = scalar_select %p683, %s40, 1
          %s685 = scalar_lea.vmem %s15, %s684
        $region80: #{tpu_custom_call.1} parent=23 // pred_fallthru
          _
      $region24: #{tpu_custom_call.1} parent=5 // pred_fallthru
        _
      %p686 = scmp.le.s32.totalorder 1, %s32
      %p687 = scmp.lt.s32.totalorder %s32, 5
      %p688 = pnand %p686, %p687
      %p689 = pneg %p688
      // Predicated region
      $region81: #{tpu_custom_call.1} parent=5 // pred_check
        _
      $region82: #{tpu_custom_call.1} parent=5 // pred_check_branch
        %691 = sbr.rel (%p688) target = $region84
      $region83: #{tpu_custom_call.1} parent=5 // pred_region
        %s692 = ssub.s32 %s32, 1
        %s693 = sand.u32 %s37, 1
        %s694 = scalar_lea.sflag [#allocation4], %s693
        %s695 = sand.u32 %s57, 1
        %s696 = smul.addr %s695, 8
        %s697 = scalar_lea.vmem [#allocation3], %s696
        // Predicated region
        $region85: #{tpu_custom_call.1} parent=83 // pred_check
          %p698 = pneg %p70
        $region86: #{tpu_custom_call.1} parent=83 // pred_check_branch
          %700 = sbr.rel (%p698) target = $region88
        $region87: #{tpu_custom_call.1} parent=83 // pred_region
          %701 = dma.done %s694, 128
        $region88: #{tpu_custom_call.1} parent=83 // pred_fallthru
          _
        %s702 = sand.u32 %s37, 1
        %s703 = scalar_lea.sflag [#allocation7], %s702
        %s704 = sand.u32 %s83, 1
        %s705 = scalar_lea.vmem [#allocation6], %s704
        // Predicated region
        $region89: #{tpu_custom_call.1} parent=83 // pred_check
          %p706 = pneg %p96
        $region90: #{tpu_custom_call.1} parent=83 // pred_check_branch
          %708 = sbr.rel (%p706) target = $region92
        $region91: #{tpu_custom_call.1} parent=83 // pred_region
          %709 = dma.done %s703, 16
        $region92: #{tpu_custom_call.1} parent=83 // pred_fallthru
          _
        // Predicated region
        $region93: #{tpu_custom_call.1} parent=83 // pred_check
          %p710 = pneg %p117
        $region94: #{tpu_custom_call.1} parent=83 // pred_check_branch
          %712 = sbr.rel (%p710) target = $region96
        $region95: #{tpu_custom_call.1} parent=83 // pred_region
          %713 = dma.done [#allocation7], 16
        $region96: #{tpu_custom_call.1} parent=83 // pred_fallthru
          _
        // Predicated region
        $region97: #{tpu_custom_call.1} parent=83 // pred_check
          %p714 = pneg %p138
        $region98: #{tpu_custom_call.1} parent=83 // pred_check_branch
          %716 = sbr.rel (%p714) target = $region100
        $region99: #{tpu_custom_call.1} parent=83 // pred_region
          %717 = dma.done [#allocation10], 16
        $region100: #{tpu_custom_call.1} parent=83 // pred_fallthru
          _
        %s718 = sand.u32 %s37, 1
        %s719 = scalar_lea.sflag [#allocation4], %s718
        %s720 = sand.u32 %s151, 1
        %s721 = smul.addr %s720, 192
        %s722 = scalar_lea.vmem [#allocation11], %s721
        // Predicated region
        $region101: #{tpu_custom_call.1} parent=83 // pred_check
          %p723 = pneg %p164
        $region102: #{tpu_custom_call.1} parent=83 // pred_check_branch
          %725 = sbr.rel (%p723) target = $region104
        $region103: #{tpu_custom_call.1} parent=83 // pred_region
          %726 = dma.done %s719, 3072
        $region104: #{tpu_custom_call.1} parent=83 // pred_fallthru
          _
        %s727 = sand.u32 %s37, 1
        %s728 = scalar_lea.sflag [#allocation7], %s727
        %s729 = sand.u32 %s203, 1
        %s730 = smul.addr %s729, 64
        %s731 = scalar_lea.vmem [#allocation12], %s730
        // Predicated region
        $region105: #{tpu_custom_call.1} parent=83 // pred_check
          %p732 = pneg %p216
        $region106: #{tpu_custom_call.1} parent=83 // pred_check_branch
          %734 = sbr.rel (%p732) target = $region108
        $region107: #{tpu_custom_call.1} parent=83 // pred_region
          %735 = dma.done %s728, 1024
        $region108: #{tpu_custom_call.1} parent=83 // pred_fallthru
          _
        %s736 = sand.u32 %s37, 1
        %s737 = scalar_lea.sflag [#allocation4], %s736
        %s738 = sand.u32 %s307, 1
        %s739 = smul.addr %s738, 256
        %s740 = scalar_lea.vmem [#allocation13], %s739
        // Predicated region
        $region109: #{tpu_custom_call.1} parent=83 // pred_check
          %p741 = pneg %p320
        $region110: #{tpu_custom_call.1} parent=83 // pred_check_branch
          %743 = sbr.rel (%p741) target = $region112
        $region111: #{tpu_custom_call.1} parent=83 // pred_region
          %744 = dma.done %s737, 4096
        $region112: #{tpu_custom_call.1} parent=83 // pred_fallthru
          _
        %s745 = sand.u32 %s37, 1
        %s746 = scalar_lea.sflag [#allocation7], %s745
        %s747 = sand.u32 %s359, 1
        %s748 = smul.addr %s747, 256
        %s749 = scalar_lea.vmem [#allocation14], %s748
        // Predicated region
        $region113: #{tpu_custom_call.1} parent=83 // pred_check
          %p750 = pneg %p372
        $region114: #{tpu_custom_call.1} parent=83 // pred_check_branch
          %752 = sbr.rel (%p750) target = $region116
        $region115: #{tpu_custom_call.1} parent=83 // pred_region
          %753 = dma.done %s746, 4096
        $region116: #{tpu_custom_call.1} parent=83 // pred_fallthru
          _
        %s754 = sand.u32 %s37, 1
        %s755 = scalar_lea.sflag [#allocation4], %s754
        %s756 = sand.u32 %s57, 1
        %s757 = smul.addr %s756, 8
        %s758 = scalar_lea.vmem [#allocation3], %s757
        %p759 = pneg %p70
        %p760 = pneg %p67
        %s761 = sand.u32 %s37, 1
        %s762 = scalar_lea.sflag [#allocation7], %s761
        %s763 = sand.u32 %s83, 1
        %s764 = scalar_lea.vmem [#allocation6], %s763
        %p765 = pneg %p96
        %p766 = pneg %p93
        %p767 = pneg %p117
        %p768 = pneg %p114
        %p769 = pneg %p138
        %p770 = pneg %p135
        %s771 = sand.u32 %s37, 1
        %s772 = scalar_lea.sflag [#allocation4], %s771
        %s773 = sand.u32 %s151, 1
        %s774 = smul.addr %s773, 192
        %s775 = scalar_lea.vmem [#allocation11], %s774
        %p776 = pneg %p164
        %p777 = pneg %p161
        %p778 = scmp.lt.s32.totalorder %s42, 1
        %s779 = scalar_select %p778, %s42, 1
        %s780 = smul.addr %s779, 3
        %s781 = scalar_lea.vmem %s5, %s780
        %p782 = pneg %p190
        %p783 = pneg %p187
        %s784 = sand.u32 %s37, 1
        %s785 = scalar_lea.sflag [#allocation7], %s784
        %s786 = sand.u32 %s203, 1
        %s787 = smul.addr %s786, 64
        %s788 = scalar_lea.vmem [#allocation12], %s787
        %p789 = pneg %p216
        %p790 = pneg %p213
        %p791 = scmp.lt.s32.totalorder %s42, 1
        %s792 = scalar_select %p791, %s42, 1
        %s793 = scalar_lea.vmem %s7, %s792
        %p794 = pneg %p242
        %p795 = pneg %p239
        %p796 = scmp.lt.s32.totalorder %s42, 1
        %s797 = scalar_select %p796, %s42, 1
        %s798 = scalar_lea.vmem %s8, %s797
        %p799 = pneg %p268
        %p800 = pneg %p265
        %p801 = scmp.lt.s32.totalorder %s42, 1
        %s802 = scalar_select %p801, %s42, 1
        %s803 = scalar_lea.vmem %s9, %s802
        %p804 = pneg %p294
        %p805 = pneg %p291
        %s806 = sand.u32 %s37, 1
        %s807 = scalar_lea.sflag [#allocation4], %s806
        %s808 = sand.u32 %s307, 1
        %s809 = smul.addr %s808, 256
        %s810 = scalar_lea.vmem [#allocation13], %s809
        %p811 = pneg %p320
        %p812 = pneg %p317
        %p813 = scmp.lt.s32.totalorder %s42, 1
        %s814 = scalar_select %p813, %s42, 1
        %s815 = smul.addr %s814, 4
        %s816 = scalar_lea.vmem %s11, %s815
        %p817 = pneg %p346
        %p818 = pneg %p343
        %s819 = sand.u32 %s37, 1
        %s820 = scalar_lea.sflag [#allocation7], %s819
        %s821 = sand.u32 %s359, 1
        %s822 = smul.addr %s821, 256
        %s823 = scalar_lea.vmem [#allocation14], %s822
        %p824 = pneg %p372
        %p825 = pneg %p369
        %p826 = scmp.lt.s32.totalorder %s42, 1
        %s827 = scalar_select %p826, %s42, 1
        %s828 = scalar_lea.vmem %s13, %s827
        %p829 = pneg %p398
        %p830 = pneg %p395
        %p831 = scmp.lt.s32.totalorder %s42, 1
        %s832 = scalar_select %p831, %s42, 1
        %s833 = scalar_lea.vmem %s14, %s832
        %p834 = pneg %p424
        %p835 = pneg %p421
        %p836 = scmp.lt.s32.totalorder %s42, 1
        %s837 = scalar_select %p836, %s42, 1
        %s838 = scalar_lea.vmem %s15, %s837
        %p839 = pneg %p450
        %p840 = pneg %p447
        %p841 = pneg %p476
        %p842 = pneg %p473
        %s843 = sand.u32 %s463, 1
        %s844 = scalar_lea.sflag [#allocation5], %s843
        %s845 = sand.u32 %s463, 1
        %s846 = smul.addr %s845, 8
        %s847 = scalar_lea.vmem [#allocation15], %s846
        %p848 = scmp.lt.s32.totalorder %s42, 1
        %s849 = scalar_select %p848, %s42, 1
        %s850 = smul.addr %s849, 3
        %s851 = scalar_lea.vmem %s5, %s850
        %p852 = scmp.lt.s32.totalorder %s42, 1
        %s853 = scalar_select %p852, %s42, 1
        %s854 = scalar_lea.vmem %s7, %s853
        %p855 = scmp.lt.s32.totalorder %s42, 1
        %s856 = scalar_select %p855, %s42, 1
        %s857 = scalar_lea.vmem %s8, %s856
        %p858 = scmp.lt.s32.totalorder %s42, 1
        %s859 = scalar_select %p858, %s42, 1
        %s860 = scalar_lea.vmem %s9, %s859
        %p861 = scmp.lt.s32.totalorder %s42, 1
        %s862 = scalar_select %p861, %s42, 1
        %s863 = smul.addr %s862, 4
        %s864 = scalar_lea.vmem %s11, %s863
        %p865 = scmp.lt.s32.totalorder %s42, 1
        %s866 = scalar_select %p865, %s42, 1
        %s867 = scalar_lea.vmem %s13, %s866
        %p868 = scmp.lt.s32.totalorder %s42, 1
        %s869 = scalar_select %p868, %s42, 1
        %s870 = scalar_lea.vmem %s14, %s869
        %p871 = scmp.lt.s32.totalorder %s42, 1
        %s872 = scalar_select %p871, %s42, 1
        %s873 = scalar_lea.vmem %s15, %s872
        %p875 = scmp.eq.s32.totalorder %s42, 0
        // Predicated region
        $region117: #{tpu_custom_call.1} parent=83 // pred_check
          %p876 = pneg %p875
        $region118: #{tpu_custom_call.1} parent=83 // pred_check_branch
          %878 = sbr.rel (%p876) target = $region120
        $region119: #{tpu_custom_call.1} parent=83 // pred_region
          %v879 = vld [vmem:[%s697] sm:$0xff]
          %v880 = vld [vmem:[#allocation8] sm:$0x1]
          %v881 = vld [vmem:[#allocation9] sm:$0x1]
          %882 = vadd.xlane.f32.xlu0 %v879
          %v883 = vpop.xlane.xlu0 %882
          %v884 = vrcp.pop 128.0
          %v885 = vmul.f32 %v883, %v884
          %v886 = vsub.f32 %v879, %v885
          %v887 = vmul.f32 %v886, %v886
          %888 = vadd.xlane.f32.xlu0 %v887
          %v889 = vpop.xlane.xlu0 %888
          %v890 = vmul.f32 %v889, %v884
          %v891 = vadd.f32 %v890, 1e-12
          %v892 = vrsqrt.pop %v891
          %v893 = vmul.f32 %v886, %v892
          %v895 = vlaneseq
          %v896 = vshrl.u32 %v895, 7
          %v897 = vsub.s32 0, %v896
          %v898 = vrot.slane %v880, %v897
          %v900 = vmul.f32 %v893, %v898
          %v902 = vlaneseq
          %v903 = vshrl.u32 %v902, 7
          %v904 = vsub.s32 0, %v903
          %v905 = vrot.slane %v881, %v904
          %v907 = vadd.f32 %v900, %v905
          %908 = vst [vmem:[#allocation2] sm:$0xff] %v907
        $region120: #{tpu_custom_call.1} parent=83 // pred_fallthru
          _
        %v909 = vld [vmem:[#allocation2] sm:$0xff]
        %v910 = vpack.c.bf16 %v909, %v909
        %v911 = vld [vmem:[%s722] sm:$0xff]
        %v912 = vld [vmem:[%s722 + $0x8] sm:$0xf]
        %v913 = vld [vmem:[%s722 + $0xc] sm:$0xff]
        %v914 = vld [vmem:[%s722 + $0x14] sm:$0xf]
        %v915 = vld [vmem:[%s722 + $0x18] sm:$0xff]
        %v916 = vld [vmem:[%s722 + $0x20] sm:$0xf]
        %v917 = vld [vmem:[%s722 + $0x24] sm:$0xff]
        %v918 = vld [vmem:[%s722 + $0x2c] sm:$0xf]
        %v919 = vld [vmem:[%s722 + $0x30] sm:$0xff]
        %v920 = vld [vmem:[%s722 + $0x38] sm:$0xf]
        %v921 = vld [vmem:[%s722 + $0x3c] sm:$0xff]
        %v922 = vld [vmem:[%s722 + $0x44] sm:$0xf]
        %v923 = vld [vmem:[%s722 + $0x48] sm:$0xff]
        %v924 = vld [vmem:[%s722 + $0x50] sm:$0xf]
        %v925 = vld [vmem:[%s722 + $0x54] sm:$0xff]
        %v926 = vld [vmem:[%s722 + $0x5c] sm:$0xf]
        %v927 = vld [vmem:[%s722 + $0x60] sm:$0xff]
        %v928 = vld [vmem:[%s722 + $0x68] sm:$0xf]
        %v929 = vld [vmem:[%s722 + $0x6c] sm:$0xff]
        %v930 = vld [vmem:[%s722 + $0x74] sm:$0xf]
        %v931 = vld [vmem:[%s722 + $0x78] sm:$0xff]
        %v932 = vld [vmem:[%s722 + $0x80] sm:$0xf]
        %v933 = vld [vmem:[%s722 + $0x84] sm:$0xff]
        %v934 = vld [vmem:[%s722 + $0x8c] sm:$0xf]
        %v935 = vld [vmem:[%s722 + $0x90] sm:$0xff]
        %v936 = vld [vmem:[%s722 + $0x98] sm:$0xf]
        %v937 = vld [vmem:[%s722 + $0x9c] sm:$0xff]
        %v938 = vld [vmem:[%s722 + $0xa4] sm:$0xf]
        %v939 = vld [vmem:[%s722 + $0xa8] sm:$0xff]
        %v940 = vld [vmem:[%s722 + $0xb0] sm:$0xf]
        %v941 = vld [vmem:[%s722 + $0xb4] sm:$0xff]
        %v942 = vld [vmem:[%s722 + $0xbc] sm:$0xf]
        %v943 = vld [vmem:[%s851] sm:$0x7]
        %v945 = vlaneseq
        %v946 = vshrl.u32 %v945, 7
        %v947 = vsub.s32 0, %v946
        %v948 = vrot.slane %v943, %v947
        %v949 = vlaneseq
        %v950 = vshrl.u32 %v949, 7
        %v951 = vsub.s32 1, %v950
        %v952 = vrot.slane %v943, %v951
        %v953 = vlaneseq
        %v954 = vshrl.u32 %v953, 7
        %v955 = vsub.s32 2, %v954
        %v956 = vrot.slane %v943, %v955
        %v992 = vunpack.c.l.b16 %v911
        %v993 = vunpack.c.h.b16 %v911
        %v994 = vunpack.c.l.b16 %v912
        %v995 = vunpack.c.l.b16 %v913
        %v996 = vunpack.c.h.b16 %v913
        %v997 = vunpack.c.l.b16 %v914
        %v998 = vunpack.c.l.b16 %v915
        %v999 = vunpack.c.h.b16 %v915
        %v1000 = vunpack.c.l.b16 %v916
        %v1001 = vunpack.c.l.b16 %v917
        %v1002 = vunpack.c.h.b16 %v917
        %v1003 = vunpack.c.l.b16 %v918
        %v1004 = vunpack.c.l.b16 %v919
        %v1005 = vunpack.c.h.b16 %v919
        %v1006 = vunpack.c.l.b16 %v920
        %v1007 = vunpack.c.l.b16 %v921
        %v1008 = vunpack.c.h.b16 %v921
        %v1009 = vunpack.c.l.b16 %v922
        %v1010 = vunpack.c.l.b16 %v923
        %v1011 = vunpack.c.h.b16 %v923
        %v1012 = vunpack.c.l.b16 %v924
        %v1013 = vunpack.c.l.b16 %v925
        %v1014 = vunpack.c.h.b16 %v925
        %v1015 = vunpack.c.l.b16 %v926
        %v1016 = vunpack.c.l.b16 %v927
        %v1017 = vunpack.c.h.b16 %v927
        %v1018 = vunpack.c.l.b16 %v928
        %v1019 = vunpack.c.l.b16 %v929
        %v1020 = vunpack.c.h.b16 %v929
        %v1021 = vunpack.c.l.b16 %v930
        %v1022 = vunpack.c.l.b16 %v931
        %v1023 = vunpack.c.h.b16 %v931
        %v1024 = vunpack.c.l.b16 %v932
        %v1025 = vunpack.c.l.b16 %v933
        %v1026 = vunpack.c.h.b16 %v933
        %v1027 = vunpack.c.l.b16 %v934
        %v1028 = vunpack.c.l.b16 %v935
        %v1029 = vunpack.c.h.b16 %v935
        %v1030 = vunpack.c.l.b16 %v936
        %v1031 = vunpack.c.l.b16 %v937
        %v1032 = vunpack.c.h.b16 %v937
        %v1033 = vunpack.c.l.b16 %v938
        %v1034 = vunpack.c.l.b16 %v939
        %v1035 = vunpack.c.h.b16 %v939
        %v1036 = vunpack.c.l.b16 %v940
        %v1037 = vunpack.c.l.b16 %v941
        %v1038 = vunpack.c.h.b16 %v941
        %v1039 = vunpack.c.l.b16 %v942
        %v1040 = vpack.c.b16 %v995, %v992
        %v1041 = vpack.c.b16 %v996, %v993
        %v1042 = vpack.c.b16 %v997, %v994
        %v1043 = vpack.c.b16 %v1001, %v998
        %v1044 = vpack.c.b16 %v1002, %v999
        %v1045 = vpack.c.b16 %v1003, %v1000
        %v1046 = vpack.c.b16 %v1007, %v1004
        %v1047 = vpack.c.b16 %v1008, %v1005
        %v1048 = vpack.c.b16 %v1009, %v1006
        %v1049 = vpack.c.b16 %v1013, %v1010
        %v1050 = vpack.c.b16 %v1014, %v1011
        %v1051 = vpack.c.b16 %v1015, %v1012
        %v1052 = vpack.c.b16 %v1019, %v1016
        %v1053 = vpack.c.b16 %v1020, %v1017
        %v1054 = vpack.c.b16 %v1021, %v1018
        %v1055 = vpack.c.b16 %v1025, %v1022
        %v1056 = vpack.c.b16 %v1026, %v1023
        %v1057 = vpack.c.b16 %v1027, %v1024
        %v1058 = vpack.c.b16 %v1031, %v1028
        %v1059 = vpack.c.b16 %v1032, %v1029
        %v1060 = vpack.c.b16 %v1033, %v1030
        %v1061 = vpack.c.b16 %v1037, %v1034
        %v1062 = vpack.c.b16 %v1038, %v1035
        %v1063 = vpack.c.b16 %v1039, %v1036
        %1088 = vmatprep.subr.bf16.mxu0 %v1041
        %1089 = vmatpush1.bf16.msra.mxu0 %v1040
        %1090 = vmatprep.subr.bf16.mxu0 %v1044
        %1091 = vmatpush1.bf16.msra.mxu0 %v1043
        %1092 = vmatprep.subr.bf16.mxu0 %v1047
        %1093 = vmatpush1.bf16.msra.mxu0 %v1046
        %1094 = vmatprep.subr.bf16.mxu0 %v1050
        %1095 = vmatpush1.bf16.msra.mxu0 %v1049
        %1096 = vmatprep.subr.bf16.mxu0 %v1053
        %1097 = vmatpush1.bf16.msra.mxu0 %v1052
        %1098 = vmatprep.subr.bf16.mxu0 %v1056
        %1099 = vmatpush1.bf16.msra.mxu0 %v1055
        %1100 = vmatprep.subr.bf16.mxu0 %v1059
        %1101 = vmatpush1.bf16.msra.mxu0 %v1058
        %1102 = vmatprep.subr.bf16.mxu0 %v1062
        %1103 = vmatpush1.bf16.msra.mxu0 %v1061
        %1104 = vmatprep.subr.bf16.mxu0 0
        %1105 = vmatpush1.bf16.msra.mxu0 0
        %1106 = vmatprep.subr.bf16.mxu0 0
        %1107 = vmatpush1.bf16.msra.mxu0 0
        %1108 = vmatprep.subr.bf16.mxu0 0
        %1109 = vmatpush1.bf16.msra.mxu0 0
        %1110 = vmatprep.subr.bf16.mxu0 0
        %1111 = vmatpush1.bf16.msra.mxu0 0
        %1112 = vmatprep.subr.bf16.mxu0 0
        %1113 = vmatpush1.bf16.msra.mxu0 0
        %1114 = vmatprep.subr.bf16.mxu0 0
        %1115 = vmatpush1.bf16.msra.mxu0 0
        %1116 = vmatprep.subr.bf16.mxu0 0
        %1117 = vmatpush1.bf16.msra.mxu0 0
        %1118 = vmatprep.subr.bf16.mxu0 0
        %1119 = vmatpush1.bf16.msra.mxu0 0
        %1120 = vmatprep.mubr.bf16.mxu0 0
        %1121 = vmatmul.mubr.bf16.gmra.mrb[0].mxu0 %v910
        %v1122 = vpop.f32.mrb[0].mxu0
        %v1123 = vadd.f32 %v948, %v1122
        %v1124 = vpop.f32.mrb[0].mxu0
        %v1125 = vadd.f32 %v952, %v1124
        %v1126 = vpop.f32.mrb[0].mxu0
        %v1127 = vpop.f32.mrb[0].mxu0
        %1128 = vdwg.mxu0
        %1129 = vmatprep.subr.bf16.mxu0 0
        %1130 = vmatpush1.bf16.msra.mxu0 %v1042
        %1131 = vmatprep.subr.bf16.mxu0 0
        %1132 = vmatpush1.bf16.msra.mxu0 %v1045
        %1133 = vmatprep.subr.bf16.mxu0 0
        %1134 = vmatpush1.bf16.msra.mxu0 %v1048
        %1135 = vmatprep.subr.bf16.mxu0 0
        %1136 = vmatpush1.bf16.msra.mxu0 %v1051
        %1137 = vmatprep.subr.bf16.mxu0 0
        %1138 = vmatpush1.bf16.msra.mxu0 %v1054
        %1139 = vmatprep.subr.bf16.mxu0 0
        %1140 = vmatpush1.bf16.msra.mxu0 %v1057
        %1141 = vmatprep.subr.bf16.mxu0 0
        %1142 = vmatpush1.bf16.msra.mxu0 %v1060
        %1143 = vmatprep.subr.bf16.mxu0 0
        %1144 = vmatpush1.bf16.msra.mxu0 %v1063
        %1145 = vmatprep.subr.bf16.mxu0 0
        %1146 = vmatpush1.bf16.msra.mxu0 0
        %1147 = vmatprep.subr.bf16.mxu0 0
        %1148 = vmatpush1.bf16.msra.mxu0 0
        %1149 = vmatprep.subr.bf16.mxu0 0
        %1150 = vmatpush1.bf16.msra.mxu0 0
        %1151 = vmatprep.subr.bf16.mxu0 0
        %1152 = vmatpush1.bf16.msra.mxu0 0
        %1153 = vmatprep.subr.bf16.mxu0 0
        %1154 = vmatpush1.bf16.msra.mxu0 0
        %1155 = vmatprep.subr.bf16.mxu0 0
        %1156 = vmatpush1.bf16.msra.mxu0 0
        %1157 = vmatprep.subr.bf16.mxu0 0
        %1158 = vmatpush1.bf16.msra.mxu0 0
        %1159 = vmatprep.subr.bf16.mxu0 0
        %1160 = vmatpush1.bf16.msra.mxu0 0
        %1161 = vmatprep.mubr.bf16.mxu0 0
        %1162 = vmatmul.mubr.bf16.gmra.mrb[0].mxu0 %v910
        %v1163 = vpop.f32.mrb[0].mxu0
        %v1164 = vadd.f32 %v956, %v1163
        %v1165 = vpop.f32.mrb[0].mxu0
        %v1166 = vpop.f32.mrb[0].mxu0
        %v1167 = vpop.f32.mrb[0].mxu0
        %1168 = vdwg.mxu0
        %v1169 = vld [vmem:[%s705] sm:$0x1]
        %v1170 = vsub.f32 1.0, %v1169
        %v1171 = vmul.f32 %v1170, -1e+09
        %v1172 = vld [vmem:[%s731] sm:$0xf]
        %v1173 = vld [vmem:[%s731 + $0x4] sm:$0xf]
        %v1174 = vld [vmem:[%s731 + $0x8] sm:$0xf]
        %v1175 = vld [vmem:[%s731 + $0xc] sm:$0xf]
        %v1176 = vld [vmem:[%s731 + $0x10] sm:$0xf]
        %v1177 = vld [vmem:[%s731 + $0x14] sm:$0xf]
        %v1178 = vld [vmem:[%s731 + $0x18] sm:$0xf]
        %v1179 = vld [vmem:[%s731 + $0x1c] sm:$0xf]
        %v1180 = vld [vmem:[%s731 + $0x20] sm:$0xf]
        %v1181 = vld [vmem:[%s731 + $0x24] sm:$0xf]
        %v1182 = vld [vmem:[%s731 + $0x28] sm:$0xf]
        %v1183 = vld [vmem:[%s731 + $0x2c] sm:$0xf]
        %v1184 = vld [vmem:[%s731 + $0x30] sm:$0xf]
        %v1185 = vld [vmem:[%s731 + $0x34] sm:$0xf]
        %v1186 = vld [vmem:[%s731 + $0x38] sm:$0xf]
        %v1187 = vld [vmem:[%s731 + $0x3c] sm:$0xf]
        %v1188 = vpack.c.bf16 %v1123, %v1123
        %v1189 = vpack.c.bf16 %v1125, %v1125
        %v1190 = vpack.c.bf16 %v1164, %v1164
        %vm1191 = vcmask 523264
        %v1193 = vsel %vm1191, %v1188, 0
        %v1196 = vsel %vm1191, %v1189, 0
        %1198 = vmatprep.subr.bf16.mxu0 0
        %1199 = vmatpush1.bf16.xpose.msra.mxu0 %v1196
        %1200 = vmatprep.subr.bf16.mxu0 0
        %1201 = vmatpush1.bf16.xpose.msra.mxu0 0
        %1202 = vmatprep.subr.bf16.mxu0 0
        %1203 = vmatpush1.bf16.xpose.msra.mxu0 0
        %1204 = vmatprep.subr.bf16.mxu0 0
        %1205 = vmatpush1.bf16.xpose.msra.mxu0 0
        %1206 = vmatprep.subr.bf16.mxu0 0
        %1207 = vmatpush1.bf16.xpose.msra.mxu0 0
        %1208 = vmatprep.subr.bf16.mxu0 0
        %1209 = vmatpush1.bf16.xpose.msra.mxu0 0
        %1210 = vmatprep.subr.bf16.mxu0 0
        %1211 = vmatpush1.bf16.xpose.msra.mxu0 0
        %1212 = vmatprep.subr.bf16.mxu0 0
        %1213 = vmatpush1.bf16.xpose.msra.mxu0 0
        %1214 = vmatprep.subr.bf16.mxu0 0
        %1215 = vmatpush1.bf16.xpose.msra.mxu0 0
        %1216 = vmatprep.subr.bf16.mxu0 0
        %1217 = vmatpush1.bf16.xpose.msra.mxu0 0
        %1218 = vmatprep.subr.bf16.mxu0 0
        %1219 = vmatpush1.bf16.xpose.msra.mxu0 0
        %1220 = vmatprep.subr.bf16.mxu0 0
        %1221 = vmatpush1.bf16.xpose.msra.mxu0 0
        %1222 = vmatprep.subr.bf16.mxu0 0
        %1223 = vmatpush1.bf16.xpose.msra.mxu0 0
        %1224 = vmatprep.subr.bf16.mxu0 0
        %1225 = vmatpush1.bf16.xpose.msra.mxu0 0
        %1226 = vmatprep.subr.bf16.mxu0 0
        %1227 = vmatpush1.bf16.xpose.msra.mxu0 0
        %1228 = vmatprep.subr.bf16.mxu0 0
        %1229 = vmatpush1.bf16.xpose.msra.mxu0 0
        %1230 = vmatprep.mubr.bf16.mxu0 0
        %1231 = vmatmul.mubr.bf16.gmra.mrb[0].mxu0 %v1193
        %v1232 = vpop.f32.mrb[0].mxu0
        %v1233 = vadd.f32 0.0, %v1232
        %v1234 = vpop.f32.mrb[0].mxu0
        %v1235 = vpop.f32.mrb[0].mxu0
        %v1236 = vpop.f32.mrb[0].mxu0
        %1237 = vdwg.mxu0
        %v1238 = vmul.f32 %v1233, 0.125
        %v1240 = vlaneseq
        %v1241 = vshrl.u32 %v1240, 7
        %v1242 = vsub.s32 0, %v1241
        %v1243 = vrot.slane %v1171, %v1242
        %v1245 = vadd.f32 %v1238, %v1243
        %vm1246 = vcmask 64512
        %v1247 = vsel %vm1246, %v1245, -inf
        %1248 = vmax.xlane.f32.xlu0 %v1247
        %v1249 = vpop.xlane.xlu0 %1248
        %v1250 = vsub.f32 %v1245, %v1249
        %v1251 = vmul.f32 %v1250, 1.442695
        %v1252 = vpow.pop %v1251
        %v1253 = vsel %vm1246, %v1252, 0.0
        %1254 = vadd.xlane.f32.xlu0 %v1253
        %v1255 = vpop.xlane.xlu0 %1254
        %v1256 = vrcp.pop %v1255
        %v1257 = vmul.f32 %v1252, %v1256
        %v1258 = vpack.c.bf16 %v1257, %v1257
        %v1260 = vsel %vm1246, %v1258, 0
        %vm1262 = vcmask 1043456
        %v1264 = vsel %vm1262, %v1190, 0
        %1266 = vmatprep.subr.bf16.mxu0 0
        %1267 = vmatpush1.bf16.msra.mxu0 %v1264
        %1268 = vmatprep.subr.bf16.mxu0 0
        %1269 = vmatpush1.bf16.msra.mxu0 0
        %1270 = vmatprep.subr.bf16.mxu0 0
        %1271 = vmatpush1.bf16.msra.mxu0 0
        %1272 = vmatprep.subr.bf16.mxu0 0
        %1273 = vmatpush1.bf16.msra.mxu0 0
        %1274 = vmatprep.subr.bf16.mxu0 0
        %1275 = vmatpush1.bf16.msra.mxu0 0
        %1276 = vmatprep.subr.bf16.mxu0 0
        %1277 = vmatpush1.bf16.msra.mxu0 0
        %1278 = vmatprep.subr.bf16.mxu0 0
        %1279 = vmatpush1.bf16.msra.mxu0 0
        %1280 = vmatprep.subr.bf16.mxu0 0
        %1281 = vmatpush1.bf16.msra.mxu0 0
        %1282 = vmatprep.subr.bf16.mxu0 0
        %1283 = vmatpush1.bf16.msra.mxu0 0
        %1284 = vmatprep.subr.bf16.mxu0 0
        %1285 = vmatpush1.bf16.msra.mxu0 0
        %1286 = vmatprep.subr.bf16.mxu0 0
        %1287 = vmatpush1.bf16.msra.mxu0 0
        %1288 = vmatprep.subr.bf16.mxu0 0
        %1289 = vmatpush1.bf16.msra.mxu0 0
        %1290 = vmatprep.subr.bf16.mxu0 0
        %1291 = vmatpush1.bf16.msra.mxu0 0
        %1292 = vmatprep.subr.bf16.mxu0 0
        %1293 = vmatpush1.bf16.msra.mxu0 0
        %1294 = vmatprep.subr.bf16.mxu0 0
        %1295 = vmatpush1.bf16.msra.mxu0 0
        %1296 = vmatprep.subr.bf16.mxu0 0
        %1297 = vmatpush1.bf16.msra.mxu0 0
        %1298 = vmatprep.mubr.bf16.mxu0 0
        %1299 = vmatmul.mubr.bf16.gmra.mrb[0].mxu0 %v1260
        %v1300 = vpop.f32.mrb[0].mxu0
        %v1301 = vadd.f32 0.0, %v1300
        %v1302 = vpop.f32.mrb[0].mxu0
        %v1303 = vpop.f32.mrb[0].mxu0
        %v1304 = vpop.f32.mrb[0].mxu0
        %1305 = vdwg.mxu0
        %v1306 = vpack.c.bf16 %v1301, %v1301
        %1308 = vrot.lane.b32.xlu0 %v1188, 64
        %v1309 = vpop.permute.xlu0 %1308
        %1311 = vrot.lane.b32.xlu0 %v1189, 64
        %v1312 = vpop.permute.xlu0 %1311
        %v1314 = vsel %vm1191, %v1309, 0
        %v1317 = vsel %vm1191, %v1312, 0
        %1319 = vmatprep.subr.bf16.mxu0 0
        %1320 = vmatpush1.bf16.xpose.msra.mxu0 %v1317
        %1321 = vmatprep.subr.bf16.mxu0 0
        %1322 = vmatpush1.bf16.xpose.msra.mxu0 0
        %1323 = vmatprep.subr.bf16.mxu0 0
        %1324 = vmatpush1.bf16.xpose.msra.mxu0 0
        %1325 = vmatprep.subr.bf16.mxu0 0
        %1326 = vmatpush1.bf16.xpose.msra.mxu0 0
        %1327 = vmatprep.subr.bf16.mxu0 0
        %1328 = vmatpush1.bf16.xpose.msra.mxu0 0
        %1329 = vmatprep.subr.bf16.mxu0 0
        %1330 = vmatpush1.bf16.xpose.msra.mxu0 0
        %1331 = vmatprep.subr.bf16.mxu0 0
        %1332 = vmatpush1.bf16.xpose.msra.mxu0 0
        %1333 = vmatprep.subr.bf16.mxu0 0
        %1334 = vmatpush1.bf16.xpose.msra.mxu0 0
        %1335 = vmatprep.subr.bf16.mxu0 0
        %1336 = vmatpush1.bf16.xpose.msra.mxu0 0
        %1337 = vmatprep.subr.bf16.mxu0 0
        %1338 = vmatpush1.bf16.xpose.msra.mxu0 0
        %1339 = vmatprep.subr.bf16.mxu0 0
        %1340 = vmatpush1.bf16.xpose.msra.mxu0 0
        %1341 = vmatprep.subr.bf16.mxu0 0
        %1342 = vmatpush1.bf16.xpose.msra.mxu0 0
        %1343 = vmatprep.subr.bf16.mxu0 0
        %1344 = vmatpush1.bf16.xpose.msra.mxu0 0
        %1345 = vmatprep.subr.bf16.mxu0 0
        %1346 = vmatpush1.bf16.xpose.msra.mxu0 0
        %1347 = vmatprep.subr.bf16.mxu0 0
        %1348 = vmatpush1.bf16.xpose.msra.mxu0 0
        %1349 = vmatprep.subr.bf16.mxu0 0
        %1350 = vmatpush1.bf16.xpose.msra.mxu0 0
        %1351 = vmatprep.mubr.bf16.mxu0 0
        %1352 = vmatmul.mubr.bf16.gmra.mrb[0].mxu0 %v1314
        %v1353 = vpop.f32.mrb[0].mxu0
        %v1354 = vadd.f32 0.0, %v1353
        %v1355 = vpop.f32.mrb[0].mxu0
        %v1356 = vpop.f32.mrb[0].mxu0
        %v1357 = vpop.f32.mrb[0].mxu0
        %1358 = vdwg.mxu0
        %v1359 = vmul.f32 %v1354, 0.125
        %v1360 = vadd.f32 %v1359, %v1243
        %v1361 = vsel %vm1246, %v1360, -inf
        %1362 = vmax.xlane.f32.xlu0 %v1361
        %v1363 = vpop.xlane.xlu0 %1362
        %v1364 = vsub.f32 %v1360, %v1363
        %v1365 = vmul.f32 %v1364, 1.442695
        %v1366 = vpow.pop %v1365
        %v1367 = vsel %vm1246, %v1366, 0.0
        %1368 = vadd.xlane.f32.xlu0 %v1367
        %v1369 = vpop.xlane.xlu0 %1368
        %v1370 = vrcp.pop %v1369
        %v1371 = vmul.f32 %v1366, %v1370
        %v1372 = vpack.c.bf16 %v1371, %v1371
        %1374 = vrot.lane.b32.xlu0 %v1190, 64
        %v1375 = vpop.permute.xlu0 %1374
        %v1377 = vsel %vm1246, %v1372, 0
        %v1380 = vsel %vm1262, %v1375, 0
        %1382 = vmatprep.subr.bf16.mxu0 0
        %1383 = vmatpush1.bf16.msra.mxu0 %v1380
        %1384 = vmatprep.subr.bf16.mxu0 0
        %1385 = vmatpush1.bf16.msra.mxu0 0
        %1386 = vmatprep.subr.bf16.mxu0 0
        %1387 = vmatpush1.bf16.msra.mxu0 0
        %1388 = vmatprep.subr.bf16.mxu0 0
        %1389 = vmatpush1.bf16.msra.mxu0 0
        %1390 = vmatprep.subr.bf16.mxu0 0
        %1391 = vmatpush1.bf16.msra.mxu0 0
        %1392 = vmatprep.subr.bf16.mxu0 0
        %1393 = vmatpush1.bf16.msra.mxu0 0
        %1394 = vmatprep.subr.bf16.mxu0 0
        %1395 = vmatpush1.bf16.msra.mxu0 0
        %1396 = vmatprep.subr.bf16.mxu0 0
        %1397 = vmatpush1.bf16.msra.mxu0 0
        %1398 = vmatprep.subr.bf16.mxu0 0
        %1399 = vmatpush1.bf16.msra.mxu0 0
        %1400 = vmatprep.subr.bf16.mxu0 0
        %1401 = vmatpush1.bf16.msra.mxu0 0
        %1402 = vmatprep.subr.bf16.mxu0 0
        %1403 = vmatpush1.bf16.msra.mxu0 0
        %1404 = vmatprep.subr.bf16.mxu0 0
        %1405 = vmatpush1.bf16.msra.mxu0 0
        %1406 = vmatprep.subr.bf16.mxu0 0
        %1407 = vmatpush1.bf16.msra.mxu0 0
        %1408 = vmatprep.subr.bf16.mxu0 0
        %1409 = vmatpush1.bf16.msra.mxu0 0
        %1410 = vmatprep.subr.bf16.mxu0 0
        %1411 = vmatpush1.bf16.msra.mxu0 0
        %1412 = vmatprep.subr.bf16.mxu0 0
        %1413 = vmatpush1.bf16.msra.mxu0 0
        %1414 = vmatprep.mubr.bf16.mxu0 0
        %1415 = vmatmul.mubr.bf16.gmra.mrb[0].mxu0 %v1377
        %v1416 = vpop.f32.mrb[0].mxu0
        %v1417 = vadd.f32 0.0, %v1416
        %v1418 = vpop.f32.mrb[0].mxu0
        %v1419 = vpop.f32.mrb[0].mxu0
        %v1420 = vpop.f32.mrb[0].mxu0
        %1421 = vdwg.mxu0
        %v1422 = vpack.c.bf16 %v1417, %v1417
        %v1431 = vunpack.c.l.b16 %v1180
        %v1432 = vunpack.c.l.b16 %v1181
        %v1433 = vunpack.c.l.b16 %v1182
        %v1434 = vunpack.c.l.b16 %v1183
        %v1435 = vunpack.c.l.b16 %v1184
        %v1436 = vunpack.c.l.b16 %v1185
        %v1437 = vunpack.c.l.b16 %v1186
        %v1438 = vunpack.c.l.b16 %v1187
        %v1439 = vpack.c.b16 %v1432, %v1431
        %v1440 = vpack.c.b16 %v1434, %v1433
        %v1441 = vpack.c.b16 %v1436, %v1435
        %v1442 = vpack.c.b16 %v1438, %v1437
        %v1448 = vsel %vm1191, %v1422, 0
        %1450 = vmatprep.subr.bf16.mxu0 0
        %1451 = vmatpush1.bf16.msra.mxu0 %v1439
        %1452 = vmatprep.subr.bf16.mxu0 0
        %1453 = vmatpush1.bf16.msra.mxu0 %v1440
        %1454 = vmatprep.subr.bf16.mxu0 0
        %1455 = vmatpush1.bf16.msra.mxu0 %v1441
        %1456 = vmatprep.subr.bf16.mxu0 0
        %1457 = vmatpush1.bf16.msra.mxu0 %v1442
        %1458 = vmatprep.subr.bf16.mxu0 0
        %1459 = vmatpush1.bf16.msra.mxu0 0
        %1460 = vmatprep.subr.bf16.mxu0 0
        %1461 = vmatpush1.bf16.msra.mxu0 0
        %1462 = vmatprep.subr.bf16.mxu0 0
        %1463 = vmatpush1.bf16.msra.mxu0 0
        %1464 = vmatprep.subr.bf16.mxu0 0
        %1465 = vmatpush1.bf16.msra.mxu0 0
        %1466 = vmatprep.subr.bf16.mxu0 0
        %1467 = vmatpush1.bf16.msra.mxu0 0
        %1468 = vmatprep.subr.bf16.mxu0 0
        %1469 = vmatpush1.bf16.msra.mxu0 0
        %1470 = vmatprep.subr.bf16.mxu0 0
        %1471 = vmatpush1.bf16.msra.mxu0 0
        %1472 = vmatprep.subr.bf16.mxu0 0
        %1473 = vmatpush1.bf16.msra.mxu0 0
        %1474 = vmatprep.subr.bf16.mxu0 0
        %1475 = vmatpush1.bf16.msra.mxu0 0
        %1476 = vmatprep.subr.bf16.mxu0 0
        %1477 = vmatpush1.bf16.msra.mxu0 0
        %1478 = vmatprep.subr.bf16.mxu0 0
        %1479 = vmatpush1.bf16.msra.mxu0 0
        %1480 = vmatprep.subr.bf16.mxu0 0
        %1481 = vmatpush1.bf16.msra.mxu0 0
        %1482 = vmatprep.mubr.bf16.mxu0 0
        %1483 = vmatmul.mubr.bf16.gmra.mrb[0].mxu0 %v1448
        %v1484 = vpop.f32.mrb[0].mxu0
        %v1485 = vadd.f32 0.0, %v1484
        %v1486 = vpop.f32.mrb[0].mxu0
        %v1487 = vpop.f32.mrb[0].mxu0
        %v1488 = vpop.f32.mrb[0].mxu0
        %1489 = vdwg.mxu0
        %v1498 = vunpack.c.l.b16 %v1172
        %v1499 = vunpack.c.l.b16 %v1173
        %v1500 = vunpack.c.l.b16 %v1174
        %v1501 = vunpack.c.l.b16 %v1175
        %v1502 = vunpack.c.l.b16 %v1176
        %v1503 = vunpack.c.l.b16 %v1177
        %v1504 = vunpack.c.l.b16 %v1178
        %v1505 = vunpack.c.l.b16 %v1179
        %v1506 = vpack.c.b16 %v1499, %v1498
        %v1507 = vpack.c.b16 %v1501, %v1500
        %v1508 = vpack.c.b16 %v1503, %v1502
        %v1509 = vpack.c.b16 %v1505, %v1504
        %v1515 = vsel %vm1191, %v1306, 0
        %1517 = vmatprep.subr.bf16.mxu0 0
        %1518 = vmatpush1.bf16.msra.mxu0 %v1506
        %1519 = vmatprep.subr.bf16.mxu0 0
        %1520 = vmatpush1.bf16.msra.mxu0 %v1507
        %1521 = vmatprep.subr.bf16.mxu0 0
        %1522 = vmatpush1.bf16.msra.mxu0 %v1508
        %1523 = vmatprep.subr.bf16.mxu0 0
        %1524 = vmatpush1.bf16.msra.mxu0 %v1509
        %1525 = vmatprep.subr.bf16.mxu0 0
        %1526 = vmatpush1.bf16.msra.mxu0 0
        %1527 = vmatprep.subr.bf16.mxu0 0
        %1528 = vmatpush1.bf16.msra.mxu0 0
        %1529 = vmatprep.subr.bf16.mxu0 0
        %1530 = vmatpush1.bf16.msra.mxu0 0
        %1531 = vmatprep.subr.bf16.mxu0 0
        %1532 = vmatpush1.bf16.msra.mxu0 0
        %1533 = vmatprep.subr.bf16.mxu0 0
        %1534 = vmatpush1.bf16.msra.mxu0 0
        %1535 = vmatprep.subr.bf16.mxu0 0
        %1536 = vmatpush1.bf16.msra.mxu0 0
        %1537 = vmatprep.subr.bf16.mxu0 0
        %1538 = vmatpush1.bf16.msra.mxu0 0
        %1539 = vmatprep.subr.bf16.mxu0 0
        %1540 = vmatpush1.bf16.msra.mxu0 0
        %1541 = vmatprep.subr.bf16.mxu0 0
        %1542 = vmatpush1.bf16.msra.mxu0 0
        %1543 = vmatprep.subr.bf16.mxu0 0
        %1544 = vmatpush1.bf16.msra.mxu0 0
        %1545 = vmatprep.subr.bf16.mxu0 0
        %1546 = vmatpush1.bf16.msra.mxu0 0
        %1547 = vmatprep.subr.bf16.mxu0 0
        %1548 = vmatpush1.bf16.msra.mxu0 0
        %1549 = vmatprep.mubr.bf16.mxu0 0
        %1550 = vmatmul.mubr.bf16.gmra.mrb[0].mxu0 %v1515
        %v1551 = vpop.f32.mrb[0].mxu0
        %v1552 = vadd.f32 %v1485, %v1551
        %v1553 = vpop.f32.mrb[0].mxu0
        %v1554 = vpop.f32.mrb[0].mxu0
        %v1555 = vpop.f32.mrb[0].mxu0
        %1556 = vdwg.mxu0
        %v1557 = vld [vmem:[%s854] sm:$0x1]
        %v1559 = vlaneseq
        %v1560 = vshrl.u32 %v1559, 7
        %v1561 = vsub.s32 0, %v1560
        %v1562 = vrot.slane %v1557, %v1561
        %v1564 = vadd.f32 %v1552, %v1562
        %v1565 = vadd.f32 %v1564, %v909
        %v1566 = vld [vmem:[%s857] sm:$0x1]
        %v1567 = vld [vmem:[%s860] sm:$0x1]
        %1568 = vadd.xlane.f32.xlu0 %v1565
        %v1569 = vpop.xlane.xlu0 %1568
        %v1570 = vrcp.pop 128.0
        %v1571 = vmul.f32 %v1569, %v1570
        %v1572 = vsub.f32 %v1565, %v1571
        %v1573 = vmul.f32 %v1572, %v1572
        %1574 = vadd.xlane.f32.xlu0 %v1573
        %v1575 = vpop.xlane.xlu0 %1574
        %v1576 = vmul.f32 %v1575, %v1570
        %v1577 = vadd.f32 %v1576, 1e-12
        %v1578 = vrsqrt.pop %v1577
        %v1579 = vmul.f32 %v1572, %v1578
        %v1581 = vlaneseq
        %v1582 = vshrl.u32 %v1581, 7
        %v1583 = vsub.s32 0, %v1582
        %v1584 = vrot.slane %v1566, %v1583
        %v1586 = vmul.f32 %v1579, %v1584
        %v1588 = vlaneseq
        %v1589 = vshrl.u32 %v1588, 7
        %v1590 = vsub.s32 0, %v1589
        %v1591 = vrot.slane %v1567, %v1590
        %v1593 = vadd.f32 %v1586, %v1591
        %v1594 = vpack.c.bf16 %v1593, %v1593
        %v1595 = vld [vmem:[%s740] sm:$0xff]
        %v1596 = vld [vmem:[%s740 + $0x8] sm:$0xff]
        %v1597 = vld [vmem:[%s740 + $0x10] sm:$0xff]
        %v1598 = vld [vmem:[%s740 + $0x18] sm:$0xff]
        %v1599 = vld [vmem:[%s740 + $0x20] sm:$0xff]
        %v1600 = vld [vmem:[%s740 + $0x28] sm:$0xff]
        %v1601 = vld [vmem:[%s740 + $0x30] sm:$0xff]
        %v1602 = vld [vmem:[%s740 + $0x38] sm:$0xff]
        %v1603 = vld [vmem:[%s740 + $0x40] sm:$0xff]
        %v1604 = vld [vmem:[%s740 + $0x48] sm:$0xff]
        %v1605 = vld [vmem:[%s740 + $0x50] sm:$0xff]
        %v1606 = vld [vmem:[%s740 + $0x58] sm:$0xff]
        %v1607 = vld [vmem:[%s740 + $0x60] sm:$0xff]
        %v1608 = vld [vmem:[%s740 + $0x68] sm:$0xff]
        %v1609 = vld [vmem:[%s740 + $0x70] sm:$0xff]
        %v1610 = vld [vmem:[%s740 + $0x78] sm:$0xff]
        %v1611 = vld [vmem:[%s740 + $0x80] sm:$0xff]
        %v1612 = vld [vmem:[%s740 + $0x88] sm:$0xff]
        %v1613 = vld [vmem:[%s740 + $0x90] sm:$0xff]
        %v1614 = vld [vmem:[%s740 + $0x98] sm:$0xff]
        %v1615 = vld [vmem:[%s740 + $0xa0] sm:$0xff]
        %v1616 = vld [vmem:[%s740 + $0xa8] sm:$0xff]
        %v1617 = vld [vmem:[%s740 + $0xb0] sm:$0xff]
        %v1618 = vld [vmem:[%s740 + $0xb8] sm:$0xff]
        %v1619 = vld [vmem:[%s740 + $0xc0] sm:$0xff]
        %v1620 = vld [vmem:[%s740 + $0xc8] sm:$0xff]
        %v1621 = vld [vmem:[%s740 + $0xd0] sm:$0xff]
        %v1622 = vld [vmem:[%s740 + $0xd8] sm:$0xff]
        %v1623 = vld [vmem:[%s740 + $0xe0] sm:$0xff]
        %v1624 = vld [vmem:[%s740 + $0xe8] sm:$0xff]
        %v1625 = vld [vmem:[%s740 + $0xf0] sm:$0xff]
        %v1626 = vld [vmem:[%s740 + $0xf8] sm:$0xff]
        %v1627 = vld [vmem:[%s864] sm:$0xf]
        %v1629 = vlaneseq
        %v1630 = vshrl.u32 %v1629, 7
        %v1631 = vsub.s32 0, %v1630
        %v1632 = vrot.slane %v1627, %v1631
        %v1633 = vlaneseq
        %v1634 = vshrl.u32 %v1633, 7
        %v1635 = vsub.s32 1, %v1634
        %v1636 = vrot.slane %v1627, %v1635
        %v1637 = vlaneseq
        %v1638 = vshrl.u32 %v1637, 7
        %v1639 = vsub.s32 2, %v1638
        %v1640 = vrot.slane %v1627, %v1639
        %v1641 = vlaneseq
        %v1642 = vshrl.u32 %v1641, 7
        %v1643 = vsub.s32 3, %v1642
        %v1644 = vrot.slane %v1627, %v1643
        %v1681 = vunpack.c.l.b16 %v1595
        %v1682 = vunpack.c.h.b16 %v1595
        %v1683 = vunpack.c.l.b16 %v1596
        %v1684 = vunpack.c.h.b16 %v1596
        %v1685 = vunpack.c.l.b16 %v1597
        %v1686 = vunpack.c.h.b16 %v1597
        %v1687 = vunpack.c.l.b16 %v1598
        %v1688 = vunpack.c.h.b16 %v1598
        %v1689 = vunpack.c.l.b16 %v1599
        %v1690 = vunpack.c.h.b16 %v1599
        %v1691 = vunpack.c.l.b16 %v1600
        %v1692 = vunpack.c.h.b16 %v1600
        %v1693 = vunpack.c.l.b16 %v1601
        %v1694 = vunpack.c.h.b16 %v1601
        %v1695 = vunpack.c.l.b16 %v1602
        %v1696 = vunpack.c.h.b16 %v1602
        %v1697 = vunpack.c.l.b16 %v1603
        %v1698 = vunpack.c.h.b16 %v1603
        %v1699 = vunpack.c.l.b16 %v1604
        %v1700 = vunpack.c.h.b16 %v1604
        %v1701 = vunpack.c.l.b16 %v1605
        %v1702 = vunpack.c.h.b16 %v1605
        %v1703 = vunpack.c.l.b16 %v1606
        %v1704 = vunpack.c.h.b16 %v1606
        %v1705 = vunpack.c.l.b16 %v1607
        %v1706 = vunpack.c.h.b16 %v1607
        %v1707 = vunpack.c.l.b16 %v1608
        %v1708 = vunpack.c.h.b16 %v1608
        %v1709 = vunpack.c.l.b16 %v1609
        %v1710 = vunpack.c.h.b16 %v1609
        %v1711 = vunpack.c.l.b16 %v1610
        %v1712 = vunpack.c.h.b16 %v1610
        %v1713 = vunpack.c.l.b16 %v1611
        %v1714 = vunpack.c.h.b16 %v1611
        %v1715 = vunpack.c.l.b16 %v1612
        %v1716 = vunpack.c.h.b16 %v1612
        %v1717 = vunpack.c.l.b16 %v1613
        %v1718 = vunpack.c.h.b16 %v1613
        %v1719 = vunpack.c.l.b16 %v1614
        %v1720 = vunpack.c.h.b16 %v1614
        %v1721 = vunpack.c.l.b16 %v1615
        %v1722 = vunpack.c.h.b16 %v1615
        %v1723 = vunpack.c.l.b16 %v1616
        %v1724 = vunpack.c.h.b16 %v1616
        %v1725 = vunpack.c.l.b16 %v1617
        %v1726 = vunpack.c.h.b16 %v1617
        %v1727 = vunpack.c.l.b16 %v1618
        %v1728 = vunpack.c.h.b16 %v1618
        %v1729 = vunpack.c.l.b16 %v1619
        %v1730 = vunpack.c.h.b16 %v1619
        %v1731 = vunpack.c.l.b16 %v1620
        %v1732 = vunpack.c.h.b16 %v1620
        %v1733 = vunpack.c.l.b16 %v1621
        %v1734 = vunpack.c.h.b16 %v1621
        %v1735 = vunpack.c.l.b16 %v1622
        %v1736 = vunpack.c.h.b16 %v1622
        %v1737 = vunpack.c.l.b16 %v1623
        %v1738 = vunpack.c.h.b16 %v1623
        %v1739 = vunpack.c.l.b16 %v1624
        %v1740 = vunpack.c.h.b16 %v1624
        %v1741 = vunpack.c.l.b16 %v1625
        %v1742 = vunpack.c.h.b16 %v1625
        %v1743 = vunpack.c.l.b16 %v1626
        %v1744 = vunpack.c.h.b16 %v1626
        %v1745 = vpack.c.b16 %v1685, %v1681
        %v1746 = vpack.c.b16 %v1686, %v1682
        %v1747 = vpack.c.b16 %v1687, %v1683
        %v1748 = vpack.c.b16 %v1688, %v1684
        %v1749 = vpack.c.b16 %v1693, %v1689
        %v1750 = vpack.c.b16 %v1694, %v1690
        %v1751 = vpack.c.b16 %v1695, %v1691
        %v1752 = vpack.c.b16 %v1696, %v1692
        %v1753 = vpack.c.b16 %v1701, %v1697
        %v1754 = vpack.c.b16 %v1702, %v1698
        %v1755 = vpack.c.b16 %v1703, %v1699
        %v1756 = vpack.c.b16 %v1704, %v1700
        %v1757 = vpack.c.b16 %v1709, %v1705
        %v1758 = vpack.c.b16 %v1710, %v1706
        %v1759 = vpack.c.b16 %v1711, %v1707
        %v1760 = vpack.c.b16 %v1712, %v1708
        %v1761 = vpack.c.b16 %v1717, %v1713
        %v1762 = vpack.c.b16 %v1718, %v1714
        %v1763 = vpack.c.b16 %v1719, %v1715
        %v1764 = vpack.c.b16 %v1720, %v1716
        %v1765 = vpack.c.b16 %v1725, %v1721
        %v1766 = vpack.c.b16 %v1726, %v1722
        %v1767 = vpack.c.b16 %v1727, %v1723
        %v1768 = vpack.c.b16 %v1728, %v1724
        %v1769 = vpack.c.b16 %v1733, %v1729
        %v1770 = vpack.c.b16 %v1734, %v1730
        %v1771 = vpack.c.b16 %v1735, %v1731
        %v1772 = vpack.c.b16 %v1736, %v1732
        %v1773 = vpack.c.b16 %v1741, %v1737
        %v1774 = vpack.c.b16 %v1742, %v1738
        %v1775 = vpack.c.b16 %v1743, %v1739
        %v1776 = vpack.c.b16 %v1744, %v1740
        %1809 = vmatprep.subr.bf16.mxu0 %v1746
        %1810 = vmatpush1.bf16.msra.mxu0 %v1745
        %1811 = vmatprep.subr.bf16.mxu0 %v1750
        %1812 = vmatpush1.bf16.msra.mxu0 %v1749
        %1813 = vmatprep.subr.bf16.mxu0 %v1754
        %1814 = vmatpush1.bf16.msra.mxu0 %v1753
        %1815 = vmatprep.subr.bf16.mxu0 %v1758
        %1816 = vmatpush1.bf16.msra.mxu0 %v1757
        %1817 = vmatprep.subr.bf16.mxu0 %v1762
        %1818 = vmatpush1.bf16.msra.mxu0 %v1761
        %1819 = vmatprep.subr.bf16.mxu0 %v1766
        %1820 = vmatpush1.bf16.msra.mxu0 %v1765
        %1821 = vmatprep.subr.bf16.mxu0 %v1770
        %1822 = vmatpush1.bf16.msra.mxu0 %v1769
        %1823 = vmatprep.subr.bf16.mxu0 %v1774
        %1824 = vmatpush1.bf16.msra.mxu0 %v1773
        %1825 = vmatprep.subr.bf16.mxu0 0
        %1826 = vmatpush1.bf16.msra.mxu0 0
        %1827 = vmatprep.subr.bf16.mxu0 0
        %1828 = vmatpush1.bf16.msra.mxu0 0
        %1829 = vmatprep.subr.bf16.mxu0 0
        %1830 = vmatpush1.bf16.msra.mxu0 0
        %1831 = vmatprep.subr.bf16.mxu0 0
        %1832 = vmatpush1.bf16.msra.mxu0 0
        %1833 = vmatprep.subr.bf16.mxu0 0
        %1834 = vmatpush1.bf16.msra.mxu0 0
        %1835 = vmatprep.subr.bf16.mxu0 0
        %1836 = vmatpush1.bf16.msra.mxu0 0
        %1837 = vmatprep.subr.bf16.mxu0 0
        %1838 = vmatpush1.bf16.msra.mxu0 0
        %1839 = vmatprep.subr.bf16.mxu0 0
        %1840 = vmatpush1.bf16.msra.mxu0 0
        %1841 = vmatprep.mubr.bf16.mxu0 0
        %1842 = vmatmul.mubr.bf16.gmra.mrb[0].mxu0 %v1594
        %v1843 = vpop.f32.mrb[0].mxu0
        %v1844 = vadd.f32 %v1632, %v1843
        %v1845 = vpop.f32.mrb[0].mxu0
        %v1846 = vadd.f32 %v1636, %v1845
        %v1847 = vpop.f32.mrb[0].mxu0
        %v1848 = vpop.f32.mrb[0].mxu0
        %1849 = vdwg.mxu0
        %1850 = vmatprep.subr.bf16.mxu0 %v1748
        %1851 = vmatpush1.bf16.msra.mxu0 %v1747
        %1852 = vmatprep.subr.bf16.mxu0 %v1752
        %1853 = vmatpush1.bf16.msra.mxu0 %v1751
        %1854 = vmatprep.subr.bf16.mxu0 %v1756
        %1855 = vmatpush1.bf16.msra.mxu0 %v1755
        %1856 = vmatprep.subr.bf16.mxu0 %v1760
        %1857 = vmatpush1.bf16.msra.mxu0 %v1759
        %1858 = vmatprep.subr.bf16.mxu0 %v1764
        %1859 = vmatpush1.bf16.msra.mxu0 %v1763
        %1860 = vmatprep.subr.bf16.mxu0 %v1768
        %1861 = vmatpush1.bf16.msra.mxu0 %v1767
        %1862 = vmatprep.subr.bf16.mxu0 %v1772
        %1863 = vmatpush1.bf16.msra.mxu0 %v1771
        %1864 = vmatprep.subr.bf16.mxu0 %v1776
        %1865 = vmatpush1.bf16.msra.mxu0 %v1775
        %1866 = vmatprep.subr.bf16.mxu0 0
        %1867 = vmatpush1.bf16.msra.mxu0 0
        %1868 = vmatprep.subr.bf16.mxu0 0
        %1869 = vmatpush1.bf16.msra.mxu0 0
        %1870 = vmatprep.subr.bf16.mxu0 0
        %1871 = vmatpush1.bf16.msra.mxu0 0
        %1872 = vmatprep.subr.bf16.mxu0 0
        %1873 = vmatpush1.bf16.msra.mxu0 0
        %1874 = vmatprep.subr.bf16.mxu0 0
        %1875 = vmatpush1.bf16.msra.mxu0 0
        %1876 = vmatprep.subr.bf16.mxu0 0
        %1877 = vmatpush1.bf16.msra.mxu0 0
        %1878 = vmatprep.subr.bf16.mxu0 0
        %1879 = vmatpush1.bf16.msra.mxu0 0
        %1880 = vmatprep.subr.bf16.mxu0 0
        %1881 = vmatpush1.bf16.msra.mxu0 0
        %1882 = vmatprep.mubr.bf16.mxu0 0
        %1883 = vmatmul.mubr.bf16.gmra.mrb[0].mxu0 %v1594
        %v1884 = vpop.f32.mrb[0].mxu0
        %v1885 = vadd.f32 %v1640, %v1884
        %v1886 = vpop.f32.mrb[0].mxu0
        %v1887 = vadd.f32 %v1644, %v1886
        %v1888 = vpop.f32.mrb[0].mxu0
        %v1889 = vpop.f32.mrb[0].mxu0
        %1890 = vdwg.mxu0
        %v1891 = vmul.f32 %v1844, %v1844
        %v1892 = vmul.f32 %v1846, %v1846
        %v1893 = vmul.f32 %v1885, %v1885
        %v1894 = vmul.f32 %v1887, %v1887
        %v1895 = vmul.f32 %v1844, %v1891
        %v1896 = vmul.f32 %v1846, %v1892
        %v1897 = vmul.f32 %v1885, %v1893
        %v1898 = vmul.f32 %v1887, %v1894
        %v1899 = vmul.f32 %v1895, 0.044715
        %v1900 = vmul.f32 %v1896, 0.044715
        %v1901 = vmul.f32 %v1897, 0.044715
        %v1902 = vmul.f32 %v1898, 0.044715
        %v1903 = vadd.f32 %v1844, %v1899
        %v1904 = vadd.f32 %v1846, %v1900
        %v1905 = vadd.f32 %v1885, %v1901
        %v1906 = vadd.f32 %v1887, %v1902
        %v1907 = vmul.f32 %v1903, 0.7978846
        %v1908 = vmul.f32 %v1904, 0.7978846
        %v1909 = vmul.f32 %v1905, 0.7978846
        %v1910 = vmul.f32 %v1906, 0.7978846
        %v1911 = vtanh.pop %v1907
        %v1912 = vtanh.pop %v1908
        %v1913 = vtanh.pop %v1909
        %v1914 = vtanh.pop %v1910
        %v1915 = vadd.f32 %v1911, 1.0
        %v1916 = vadd.f32 %v1912, 1.0
        %v1917 = vadd.f32 %v1913, 1.0
        %v1918 = vadd.f32 %v1914, 1.0
        %v1919 = vmul.f32 %v1915, 0.5
        %v1920 = vmul.f32 %v1916, 0.5
        %v1921 = vmul.f32 %v1917, 0.5
        %v1922 = vmul.f32 %v1918, 0.5
        %v1923 = vmul.f32 %v1844, %v1919
        %v1924 = vmul.f32 %v1846, %v1920
        %v1925 = vmul.f32 %v1885, %v1921
        %v1926 = vmul.f32 %v1887, %v1922
        %v1927 = vpack.c.bf16 %v1923, %v1923
        %v1928 = vpack.c.bf16 %v1924, %v1924
        %v1929 = vpack.c.bf16 %v1925, %v1925
        %v1930 = vpack.c.bf16 %v1926, %v1926
        %v1931 = vld [vmem:[%s749] sm:$0xf]
        %v1932 = vld [vmem:[%s749 + $0x4] sm:$0xf]
        %v1933 = vld [vmem:[%s749 + $0x8] sm:$0xf]
        %v1934 = vld [vmem:[%s749 + $0xc] sm:$0xf]
        %v1935 = vld [vmem:[%s749 + $0x10] sm:$0xf]
        %v1936 = vld [vmem:[%s749 + $0x14] sm:$0xf]
        %v1937 = vld [vmem:[%s749 + $0x18] sm:$0xf]
        %v1938 = vld [vmem:[%s749 + $0x1c] sm:$0xf]
        %v1939 = vld [vmem:[%s749 + $0x20] sm:$0xf]
        %v1940 = vld [vmem:[%s749 + $0x24] sm:$0xf]
        %v1941 = vld [vmem:[%s749 + $0x28] sm:$0xf]
        %v1942 = vld [vmem:[%s749 + $0x2c] sm:$0xf]
        %v1943 = vld [vmem:[%s749 + $0x30] sm:$0xf]
        %v1944 = vld [vmem:[%s749 + $0x34] sm:$0xf]
        %v1945 = vld [vmem:[%s749 + $0x38] sm:$0xf]
        %v1946 = vld [vmem:[%s749 + $0x3c] sm:$0xf]
        %v1947 = vld [vmem:[%s749 + $0x40] sm:$0xf]
        %v1948 = vld [vmem:[%s749 + $0x44] sm:$0xf]
        %v1949 = vld [vmem:[%s749 + $0x48] sm:$0xf]
        %v1950 = vld [vmem:[%s749 + $0x4c] sm:$0xf]
        %v1951 = vld [vmem:[%s749 + $0x50] sm:$0xf]
        %v1952 = vld [vmem:[%s749 + $0x54] sm:$0xf]
        %v1953 = vld [vmem:[%s749 + $0x58] sm:$0xf]
        %v1954 = vld [vmem:[%s749 + $0x5c] sm:$0xf]
        %v1955 = vld [vmem:[%s749 + $0x60] sm:$0xf]
        %v1956 = vld [vmem:[%s749 + $0x64] sm:$0xf]
        %v1957 = vld [vmem:[%s749 + $0x68] sm:$0xf]
        %v1958 = vld [vmem:[%s749 + $0x6c] sm:$0xf]
        %v1959 = vld [vmem:[%s749 + $0x70] sm:$0xf]
        %v1960 = vld [vmem:[%s749 + $0x74] sm:$0xf]
        %v1961 = vld [vmem:[%s749 + $0x78] sm:$0xf]
        %v1962 = vld [vmem:[%s749 + $0x7c] sm:$0xf]
        %v1963 = vld [vmem:[%s749 + $0x80] sm:$0xf]
        %v1964 = vld [vmem:[%s749 + $0x84] sm:$0xf]
        %v1965 = vld [vmem:[%s749 + $0x88] sm:$0xf]
        %v1966 = vld [vmem:[%s749 + $0x8c] sm:$0xf]
        %v1967 = vld [vmem:[%s749 + $0x90] sm:$0xf]
        %v1968 = vld [vmem:[%s749 + $0x94] sm:$0xf]
        %v1969 = vld [vmem:[%s749 + $0x98] sm:$0xf]
        %v1970 = vld [vmem:[%s749 + $0x9c] sm:$0xf]
        %v1971 = vld [vmem:[%s749 + $0xa0] sm:$0xf]
        %v1972 = vld [vmem:[%s749 + $0xa4] sm:$0xf]
        %v1973 = vld [vmem:[%s749 + $0xa8] sm:$0xf]
        %v1974 = vld [vmem:[%s749 + $0xac] sm:$0xf]
        %v1975 = vld [vmem:[%s749 + $0xb0] sm:$0xf]
        %v1976 = vld [vmem:[%s749 + $0xb4] sm:$0xf]
        %v1977 = vld [vmem:[%s749 + $0xb8] sm:$0xf]
        %v1978 = vld [vmem:[%s749 + $0xbc] sm:$0xf]
        %v1979 = vld [vmem:[%s749 + $0xc0] sm:$0xf]
        %v1980 = vld [vmem:[%s749 + $0xc4] sm:$0xf]
        %v1981 = vld [vmem:[%s749 + $0xc8] sm:$0xf]
        %v1982 = vld [vmem:[%s749 + $0xcc] sm:$0xf]
        %v1983 = vld [vmem:[%s749 + $0xd0] sm:$0xf]
        %v1984 = vld [vmem:[%s749 + $0xd4] sm:$0xf]
        %v1985 = vld [vmem:[%s749 + $0xd8] sm:$0xf]
        %v1986 = vld [vmem:[%s749 + $0xdc] sm:$0xf]
        %v1987 = vld [vmem:[%s749 + $0xe0] sm:$0xf]
        %v1988 = vld [vmem:[%s749 + $0xe4] sm:$0xf]
        %v1989 = vld [vmem:[%s749 + $0xe8] sm:$0xf]
        %v1990 = vld [vmem:[%s749 + $0xec] sm:$0xf]
        %v1991 = vld [vmem:[%s749 + $0xf0] sm:$0xf]
        %v1992 = vld [vmem:[%s749 + $0xf4] sm:$0xf]
        %v1993 = vld [vmem:[%s749 + $0xf8] sm:$0xf]
        %v1994 = vld [vmem:[%s749 + $0xfc] sm:$0xf]
        %v1995 = vld [vmem:[%s867] sm:$0x1]
        %v1997 = vlaneseq
        %v1998 = vshrl.u32 %v1997, 7
        %v1999 = vsub.s32 0, %v1998
        %v2000 = vrot.slane %v1995, %v1999
        %v2066 = vunpack.c.l.b16 %v1931
        %v2067 = vunpack.c.l.b16 %v1932
        %v2068 = vunpack.c.l.b16 %v1933
        %v2069 = vunpack.c.l.b16 %v1934
        %v2070 = vunpack.c.l.b16 %v1935
        %v2071 = vunpack.c.l.b16 %v1936
        %v2072 = vunpack.c.l.b16 %v1937
        %v2073 = vunpack.c.l.b16 %v1938
        %v2074 = vunpack.c.l.b16 %v1939
        %v2075 = vunpack.c.l.b16 %v1940
        %v2076 = vunpack.c.l.b16 %v1941
        %v2077 = vunpack.c.l.b16 %v1942
        %v2078 = vunpack.c.l.b16 %v1943
        %v2079 = vunpack.c.l.b16 %v1944
        %v2080 = vunpack.c.l.b16 %v1945
        %v2081 = vunpack.c.l.b16 %v1946
        %v2082 = vunpack.c.l.b16 %v1947
        %v2083 = vunpack.c.l.b16 %v1948
        %v2084 = vunpack.c.l.b16 %v1949
        %v2085 = vunpack.c.l.b16 %v1950
        %v2086 = vunpack.c.l.b16 %v1951
        %v2087 = vunpack.c.l.b16 %v1952
        %v2088 = vunpack.c.l.b16 %v1953
        %v2089 = vunpack.c.l.b16 %v1954
        %v2090 = vunpack.c.l.b16 %v1955
        %v2091 = vunpack.c.l.b16 %v1956
        %v2092 = vunpack.c.l.b16 %v1957
        %v2093 = vunpack.c.l.b16 %v1958
        %v2094 = vunpack.c.l.b16 %v1959
        %v2095 = vunpack.c.l.b16 %v1960
        %v2096 = vunpack.c.l.b16 %v1961
        %v2097 = vunpack.c.l.b16 %v1962
        %v2098 = vunpack.c.l.b16 %v1963
        %v2099 = vunpack.c.l.b16 %v1964
        %v2100 = vunpack.c.l.b16 %v1965
        %v2101 = vunpack.c.l.b16 %v1966
        %v2102 = vunpack.c.l.b16 %v1967
        %v2103 = vunpack.c.l.b16 %v1968
        %v2104 = vunpack.c.l.b16 %v1969
        %v2105 = vunpack.c.l.b16 %v1970
        %v2106 = vunpack.c.l.b16 %v1971
        %v2107 = vunpack.c.l.b16 %v1972
        %v2108 = vunpack.c.l.b16 %v1973
        %v2109 = vunpack.c.l.b16 %v1974
        %v2110 = vunpack.c.l.b16 %v1975
        %v2111 = vunpack.c.l.b16 %v1976
        %v2112 = vunpack.c.l.b16 %v1977
        %v2113 = vunpack.c.l.b16 %v1978
        %v2114 = vunpack.c.l.b16 %v1979
        %v2115 = vunpack.c.l.b16 %v1980
        %v2116 = vunpack.c.l.b16 %v1981
        %v2117 = vunpack.c.l.b16 %v1982
        %v2118 = vunpack.c.l.b16 %v1983
        %v2119 = vunpack.c.l.b16 %v1984
        %v2120 = vunpack.c.l.b16 %v1985
        %v2121 = vunpack.c.l.b16 %v1986
        %v2122 = vunpack.c.l.b16 %v1987
        %v2123 = vunpack.c.l.b16 %v1988
        %v2124 = vunpack.c.l.b16 %v1989
        %v2125 = vunpack.c.l.b16 %v1990
        %v2126 = vunpack.c.l.b16 %v1991
        %v2127 = vunpack.c.l.b16 %v1992
        %v2128 = vunpack.c.l.b16 %v1993
        %v2129 = vunpack.c.l.b16 %v1994
        %v2130 = vpack.c.b16 %v2067, %v2066
        %v2131 = vpack.c.b16 %v2069, %v2068
        %v2132 = vpack.c.b16 %v2071, %v2070
        %v2133 = vpack.c.b16 %v2073, %v2072
        %v2134 = vpack.c.b16 %v2075, %v2074
        %v2135 = vpack.c.b16 %v2077, %v2076
        %v2136 = vpack.c.b16 %v2079, %v2078
        %v2137 = vpack.c.b16 %v2081, %v2080
        %v2138 = vpack.c.b16 %v2083, %v2082
        %v2139 = vpack.c.b16 %v2085, %v2084
        %v2140 = vpack.c.b16 %v2087, %v2086
        %v2141 = vpack.c.b16 %v2089, %v2088
        %v2142 = vpack.c.b16 %v2091, %v2090
        %v2143 = vpack.c.b16 %v2093, %v2092
        %v2144 = vpack.c.b16 %v2095, %v2094
        %v2145 = vpack.c.b16 %v2097, %v2096
        %v2146 = vpack.c.b16 %v2099, %v2098
        %v2147 = vpack.c.b16 %v2101, %v2100
        %v2148 = vpack.c.b16 %v2103, %v2102
        %v2149 = vpack.c.b16 %v2105, %v2104
        %v2150 = vpack.c.b16 %v2107, %v2106
        %v2151 = vpack.c.b16 %v2109, %v2108
        %v2152 = vpack.c.b16 %v2111, %v2110
        %v2153 = vpack.c.b16 %v2113, %v2112
        %v2154 = vpack.c.b16 %v2115, %v2114
        %v2155 = vpack.c.b16 %v2117, %v2116
        %v2156 = vpack.c.b16 %v2119, %v2118
        %v2157 = vpack.c.b16 %v2121, %v2120
        %v2158 = vpack.c.b16 %v2123, %v2122
        %v2159 = vpack.c.b16 %v2125, %v2124
        %v2160 = vpack.c.b16 %v2127, %v2126
        %v2161 = vpack.c.b16 %v2129, %v2128
        %2194 = vmatprep.subr.bf16.mxu0 0
        %2195 = vmatpush1.bf16.msra.mxu0 %v2130
        %2196 = vmatprep.subr.bf16.mxu0 0
        %2197 = vmatpush1.bf16.msra.mxu0 %v2131
        %2198 = vmatprep.subr.bf16.mxu0 0
        %2199 = vmatpush1.bf16.msra.mxu0 %v2132
        %2200 = vmatprep.subr.bf16.mxu0 0
        %2201 = vmatpush1.bf16.msra.mxu0 %v2133
        %2202 = vmatprep.subr.bf16.mxu0 0
        %2203 = vmatpush1.bf16.msra.mxu0 %v2134
        %2204 = vmatprep.subr.bf16.mxu0 0
        %2205 = vmatpush1.bf16.msra.mxu0 %v2135
        %2206 = vmatprep.subr.bf16.mxu0 0
        %2207 = vmatpush1.bf16.msra.mxu0 %v2136
        %2208 = vmatprep.subr.bf16.mxu0 0
        %2209 = vmatpush1.bf16.msra.mxu0 %v2137
        %2210 = vmatprep.subr.bf16.mxu0 0
        %2211 = vmatpush1.bf16.msra.mxu0 %v2138
        %2212 = vmatprep.subr.bf16.mxu0 0
        %2213 = vmatpush1.bf16.msra.mxu0 %v2139
        %2214 = vmatprep.subr.bf16.mxu0 0
        %2215 = vmatpush1.bf16.msra.mxu0 %v2140
        %2216 = vmatprep.subr.bf16.mxu0 0
        %2217 = vmatpush1.bf16.msra.mxu0 %v2141
        %2218 = vmatprep.subr.bf16.mxu0 0
        %2219 = vmatpush1.bf16.msra.mxu0 %v2142
        %2220 = vmatprep.subr.bf16.mxu0 0
        %2221 = vmatpush1.bf16.msra.mxu0 %v2143
        %2222 = vmatprep.subr.bf16.mxu0 0
        %2223 = vmatpush1.bf16.msra.mxu0 %v2144
        %2224 = vmatprep.subr.bf16.mxu0 0
        %2225 = vmatpush1.bf16.msra.mxu0 %v2145
        %2226 = vmatprep.mubr.bf16.mxu0 %v1928
        %2227 = vmatmul.mubr.bf16.gmra.mrb[0].mxu0 %v1927
        %v2228 = vpop.f32.mrb[0].mxu0
        %v2229 = vadd.f32 %v2000, %v2228
        %v2230 = vpop.f32.mrb[0].mxu0
        %v2231 = vpop.f32.mrb[0].mxu0
        %v2232 = vpop.f32.mrb[0].mxu0
        %2233 = vdwg.mxu0
        %2234 = vmatprep.subr.bf16.mxu0 0
        %2235 = vmatpush1.bf16.msra.mxu0 %v2146
        %2236 = vmatprep.subr.bf16.mxu0 0
        %2237 = vmatpush1.bf16.msra.mxu0 %v2147
        %2238 = vmatprep.subr.bf16.mxu0 0
        %2239 = vmatpush1.bf16.msra.mxu0 %v2148
        %2240 = vmatprep.subr.bf16.mxu0 0
        %2241 = vmatpush1.bf16.msra.mxu0 %v2149
        %2242 = vmatprep.subr.bf16.mxu0 0
        %2243 = vmatpush1.bf16.msra.mxu0 %v2150
        %2244 = vmatprep.subr.bf16.mxu0 0
        %2245 = vmatpush1.bf16.msra.mxu0 %v2151
        %2246 = vmatprep.subr.bf16.mxu0 0
        %2247 = vmatpush1.bf16.msra.mxu0 %v2152
        %2248 = vmatprep.subr.bf16.mxu0 0
        %2249 = vmatpush1.bf16.msra.mxu0 %v2153
        %2250 = vmatprep.subr.bf16.mxu0 0
        %2251 = vmatpush1.bf16.msra.mxu0 %v2154
        %2252 = vmatprep.subr.bf16.mxu0 0
        %2253 = vmatpush1.bf16.msra.mxu0 %v2155
        %2254 = vmatprep.subr.bf16.mxu0 0
        %2255 = vmatpush1.bf16.msra.mxu0 %v2156
        %2256 = vmatprep.subr.bf16.mxu0 0
        %2257 = vmatpush1.bf16.msra.mxu0 %v2157
        %2258 = vmatprep.subr.bf16.mxu0 0
        %2259 = vmatpush1.bf16.msra.mxu0 %v2158
        %2260 = vmatprep.subr.bf16.mxu0 0
        %2261 = vmatpush1.bf16.msra.mxu0 %v2159
        %2262 = vmatprep.subr.bf16.mxu0 0
        %2263 = vmatpush1.bf16.msra.mxu0 %v2160
        %2264 = vmatprep.subr.bf16.mxu0 0
        %2265 = vmatpush1.bf16.msra.mxu0 %v2161
        %2266 = vmatprep.mubr.bf16.mxu0 %v1930
        %2267 = vmatmul.mubr.bf16.gmra.mrb[0].mxu0 %v1929
        %v2268 = vpop.f32.mrb[0].mxu0
        %v2269 = vadd.f32 %v2229, %v2268
        %v2270 = vpop.f32.mrb[0].mxu0
        %v2271 = vpop.f32.mrb[0].mxu0
        %v2272 = vpop.f32.mrb[0].mxu0
        %2273 = vdwg.mxu0
        %v2274 = vadd.f32 %v2269, %v1593
        %v2275 = vld [vmem:[%s870] sm:$0x1]
        %v2276 = vld [vmem:[%s873] sm:$0x1]
        %2277 = vadd.xlane.f32.xlu0 %v2274
        %v2278 = vpop.xlane.xlu0 %2277
        %v2279 = vmul.f32 %v2278, %v1570
        %v2280 = vsub.f32 %v2274, %v2279
        %v2281 = vmul.f32 %v2280, %v2280
        %2282 = vadd.xlane.f32.xlu0 %v2281
        %v2283 = vpop.xlane.xlu0 %2282
        %v2284 = vmul.f32 %v2283, %v1570
        %v2285 = vadd.f32 %v2284, 1e-12
        %v2286 = vrsqrt.pop %v2285
        %v2287 = vmul.f32 %v2280, %v2286
        %v2289 = vlaneseq
        %v2290 = vshrl.u32 %v2289, 7
        %v2291 = vsub.s32 0, %v2290
        %v2292 = vrot.slane %v2275, %v2291
        %v2294 = vmul.f32 %v2287, %v2292
        %v2296 = vlaneseq
        %v2297 = vshrl.u32 %v2296, 7
        %v2298 = vsub.s32 0, %v2297
        %v2299 = vrot.slane %v2276, %v2298
        %v2301 = vadd.f32 %v2294, %v2299
        %2302 = vst [vmem:[#allocation2] sm:$0xff] %v2301
        %p2303 = scmp.eq.s32.totalorder %s42, 1
        // Predicated region
        $region121: #{tpu_custom_call.1} parent=83 // pred_check
          %p2304 = pneg %p2303
        $region122: #{tpu_custom_call.1} parent=83 // pred_check_branch
          %2306 = sbr.rel (%p2304) target = $region124
        $region123: #{tpu_custom_call.1} parent=83 // pred_region
          %2307 = vst [vmem:[%s847] sm:$0xff] %v2301
        $region124: #{tpu_custom_call.1} parent=83 // pred_fallthru
          _
        %s2308 = sand.u32 %s463, 1
        %s2309 = scalar_lea.sflag [#allocation5], %s2308
        %s2310 = sand.u32 %s463, 1
        %s2311 = smul.addr %s2310, 8
        %s2312 = scalar_lea.vmem [#allocation15], %s2311
        // Predicated region
        $region125: #{tpu_custom_call.1} parent=83 // pred_check
          %p2313 = pneg %p473
        $region126: #{tpu_custom_call.1} parent=83 // pred_check_branch
          %2315 = sbr.rel (%p2313) target = $region128
        $region127: #{tpu_custom_call.1} parent=83 // pred_region
          %s2317 = ssub.s32 128, 128
          %2318 = vsyncadd %s2309, %s2317
          %s2319 = smul.addr %s41, 128
          %s2320 = scalar_lea.hbm %s16, %s2319
          %s2322 = sshll.u32 %s2312, 4
          %s2323 = int_to_ptr.vmem [resolvable:$true] %s2322
          %2325 = dma.vmem_to_hbm [thread:$0]  %s2323, 128, %s2320, %s2309
        $region128: #{tpu_custom_call.1} parent=83 // pred_fallthru
          _
      $region84: #{tpu_custom_call.1} parent=5 // pred_fallthru
        _
      %p2326 = scmp.le.s32.totalorder 2, %s32
      // Predicated region
      $region129: #{tpu_custom_call.1} parent=5 // pred_check
        %p2327 = pneg %p2326
      $region130: #{tpu_custom_call.1} parent=5 // pred_check_branch
        %2329 = sbr.rel (%p2327) target = $region132
      $region131: #{tpu_custom_call.1} parent=5 // pred_region
        %s2330 = ssub.s32 %s32, 2
        // Predicated region
        $region133: #{tpu_custom_call.1} parent=131 // pred_check
          %p2331 = pneg %p479
        $region134: #{tpu_custom_call.1} parent=131 // pred_check_branch
          %2333 = sbr.rel (%p2331) target = $region136
        $region135: #{tpu_custom_call.1} parent=131 // pred_region
          %s2334 = sand.u32 %s464, 1
          %s2335 = scalar_lea.sflag [#allocation5], %s2334
          %s2336 = sand.u32 %s464, 1
          %s2337 = smul.addr %s2336, 8
          %s2338 = scalar_lea.vmem [#allocation15], %s2337
          %2339 = dma.done %s2335, 128
        $region136: #{tpu_custom_call.1} parent=131 // pred_fallthru
          _
      $region132: #{tpu_custom_call.1} parent=5 // pred_fallthru
        _
    $region6: #{tpu_custom_call.1} parent=1 // loop_footer
      %s36 = sadd.s32 1, %s32
    $region7: #{tpu_custom_call.1} parent=1 // loop_footer_branch
      %31 = sbr.rel target = $region3
    $region8: #{tpu_custom_call.1} parent=1 // loop_exit
      _
    %2340 = vsyncpa [#allocation4], 1
    %s2341 = scalar_lea.sflag [#allocation4], 1
    %2342 = vsyncpa %s2341, 1
    %2343 = vsyncpa [#allocation7], 1
    %s2344 = scalar_lea.sflag [#allocation7], 1
    %2345 = vsyncpa %s2344, 1
    %2346 = vsyncpa [#allocation10], 1
    %2347 = vsyncpa [#allocation5], 1
    %s2348 = scalar_lea.sflag [#allocation5], 1
    %2349 = vsyncpa %s2348, 1

</llo_original>
